<compile_context>
chip_gen: v7x
topology: tpu7x:2x2x1
jax: 0.10.0
libtpu: 0.0.40
codegen_flags: <defaults>
</compile_context>

<pallas_src>
import functools

import jax
import jax.numpy as jnp
from jax.experimental import pallas as pl
from jax.experimental.pallas import tpu as pltpu


def _apply_activation(h, name):
    if name == "relu":
        return jnp.maximum(h, 0.0)
    if name == "leaky_relu":
        return jnp.where(h >= 0, h, 0.01 * h)            # F.leaky_relu default slope
    if name == "elu":
        return jnp.where(h >= 0, h, jnp.expm1(h))        # F.elu default alpha=1.0
    raise ValueError(f"unknown activation {name!r}")


def _ff_kernel(n_hidden, activation, compute_dtype, *refs):
    """refs = (x_ref, w0, b0, w1, b1, ..., w_out, b_out, o_ref).

    All tensors are already in the group-packed (lane-dense) layout; the body
    is just matmuls + elementwise, so it is identical for any group factor.
    """
    x_ref = refs[0]
    o_ref = refs[-1]
    params = refs[1:-1]

    h = x_ref[...]
    for li in range(n_hidden):
        w = params[2 * li][...]
        b = params[2 * li + 1][...]
        h = jnp.dot(h.astype(compute_dtype), w,
                    preferred_element_type=jnp.float32) + b
        h = _apply_activation(h, activation)

    w_out = params[2 * n_hidden][...]
    b_out = params[2 * n_hidden + 1][...]
    out = jnp.dot(h.astype(compute_dtype), w_out,
                  preferred_element_type=jnp.float32) + b_out
    o_ref[...] = out.astype(o_ref.dtype)


def feedforward(x, params, activation, *, group=8, max_batch_tile=8192,
                compute_dtype=None, vmem_budget_bytes=12 * 1024 * 1024):
    """Run the fused MLP Pallas kernel.

    Args:
      x: (B, in_dim) array.
      params: list of (W, b) pairs in PyTorch layout: W is (out, in), b is (out,).
              The last pair is the output layer (no activation).
      activation: one of 'relu', 'leaky_relu', 'elu'.
      group: rows packed along the lane axis (8 -> out_dim=16 becomes a dense
             128-lane store). Automatically reduced if packed weights would
             dominate the VMEM budget.
      max_batch_tile: upper bound on original rows per grid step.
      compute_dtype: dtype fed to the MXU (defaults to x.dtype). Accumulation
                     is always f32. Cast happens in-kernel (no extra HBM pass).
      vmem_budget_bytes: per-step VMEM budget used to size the batch tile.
                         12 MiB stays under every generation's scoped default
                         (v5e 16 MiB); if exceeded, vmem_limit_bytes is raised
                         explicitly (capped well under v7x's 64 MiB physical).
    """
    B, in_dim = x.shape
    n_hidden = len(params) - 1
    out_dim = int(params[-1][0].shape[0])
    out_dtype = x.dtype

    compute_dtype = jnp.dtype(x.dtype if compute_dtype is None else compute_dtype)
    w_isz = compute_dtype.itemsize
    x_isz = jnp.dtype(x.dtype).itemsize
    o_isz = jnp.dtype(out_dtype).itemsize

    # ---- group factor: lane-dense packing, shrink if packed weights too big --
    def packed_param_bytes(gg):
        total = 0
        for (w, _b) in params:
            n_out, n_in = int(w.shape[0]), int(w.shape[1])
            total += 2 * (gg * n_in) * (gg * n_out) * w_isz          # 2x double-buffered
            total += 2 * 8 * (pl.cdiv(gg * n_out, 128) * 128) * 4    # padded bias tiles
        return total

    g = max(1, int(group))
    while g > 1 and packed_param_bytes(g) > vmem_budget_bytes // 2:
        g //= 2

    # ---- pack the batch: (B, in_dim) -> (Bg, g*in_dim), contiguous reshape ---
    Bg = pl.cdiv(B, g)
    if Bg * g != B:
        x = jnp.pad(x, ((0, Bg * g - B), (0, 0)))     # zero rows: safe through elu
    xp = x.reshape(Bg, g * in_dim)

    # ---- batch-tile selection from the VMEM budget ---------------------------
    layer_out_widths = [g * int(w.shape[0]) for (w, _b) in params]
    stream_per_row = 2 * (g * in_dim) * x_isz + 2 * (g * out_dim) * o_isz
    act_per_row = 4 * (g * in_dim + sum(layer_out_widths))          # f32 intermediates
    per_row = stream_per_row + act_per_row
    avail = vmem_budget_bytes - packed_param_bytes(g)
    cap_g = max(8, avail // max(per_row, 1))
    cap_g = max(8, (cap_g // 8) * 8)
    max_tile_g = max(8, max_batch_tile // g)

    tb_g = int(min(cap_g, max_tile_g, Bg))
    if Bg >= 8:
        tb_g = max(8, (tb_g // 8) * 8)                # keep sublane tiling
    else:
        tb_g = Bg                                     # block == full array
    if Bg >= 16:
        # Guarantee >= 2 grid steps so both v7x TensorCores get work.
        half = pl.cdiv(pl.cdiv(Bg, 2), 8) * 8
        tb_g = min(tb_g, half)

    n_steps = pl.cdiv(Bg, tb_g)
    Bg_pad = n_steps * tb_g
    if Bg_pad != Bg:
        xp = jnp.pad(xp, ((0, Bg_pad - Bg), (0, 0)))  # no ragged / OOB last tile

    # ---- params: block-diagonal kron(I_g, W^T); biases tiled along lanes -----
    flat = []
    flat_specs = []
    eye_g = jnp.eye(g, dtype=jnp.float32)
    for (w, b) in params:
        wt = jnp.asarray(w, jnp.float32).T                              # (in, out)
        wbd = jnp.kron(eye_g, wt).astype(compute_dtype)                 # (g*in, g*out)
        bt = jnp.tile(jnp.asarray(b, jnp.float32).reshape(1, -1), (1, g))  # (1, g*out)
        flat += [wbd, bt]
        # Constant index_map: fetched once, VMEM-resident across all batch tiles.
        flat_specs += [
            pl.BlockSpec(wbd.shape, lambda i: (0, 0)),
            pl.BlockSpec(bt.shape, lambda i: (0, 0)),
        ]

    # ---- VMEM limit: only raised when our accounted usage needs it -----------
    accounted = packed_param_bytes(g) + tb_g * per_row
    cp_kwargs = dict(dimension_semantics=("parallel",))
    if accounted > 14 * 1024 * 1024:
        cp_kwargs["vmem_limit_bytes"] = int(min(accounted + (4 << 20), 48 << 20))
    compiler_params = pltpu.CompilerParams(**cp_kwargs)

    # ---- advisory cost estimate (lets XLA overlap the custom call) -----------
    flops = 2 * B * sum(int(w.shape[0]) * int(w.shape[1]) for (w, _b) in params)
    transcend = B * sum(int(w.shape[0]) for (w, _b) in params[:-1]) if activation == "elu" else 0
    bytes_acc = (int(xp.size) * x_isz + Bg_pad * g * out_dim * o_isz
                 + sum(int(a.size) * a.dtype.itemsize for a in flat))
    cost = pl.CostEstimate(flops=int(flops), transcendentals=int(transcend),
                           bytes_accessed=int(bytes_acc))

    kernel = functools.partial(_ff_kernel, n_hidden, activation, compute_dtype)

    out_packed = pl.pallas_call(
        kernel,
        out_shape=jax.ShapeDtypeStruct((Bg_pad, g * out_dim), out_dtype),
        grid=(n_steps,),
        in_specs=[pl.BlockSpec((tb_g, g * in_dim), lambda i: (i, 0))] + flat_specs,
        out_specs=pl.BlockSpec((tb_g, g * out_dim), lambda i: (i, 0)),
        compiler_params=compiler_params,
        cost_estimate=cost,
    )(xp, *flat)

    # Contiguous, free reshape back to (B, out_dim); drop padded rows.
    return out_packed.reshape(Bg_pad * g, out_dim)[:B]


def init_params(key, in_dim, hidden_layers, out_dim):
    """Deterministic parameter init mimicking nn.Linear shapes: W (out, in), b (out,)."""
    dims = [in_dim] + list(hidden_layers) + [out_dim]
    params = []
    for f_in, f_out in zip(dims[:-1], dims[1:]):
        key, kw, kb = jax.random.split(key, 3)
        bound = 1.0 / jnp.sqrt(f_in)
        w = jax.random.uniform(kw, (f_out, f_in), jnp.float32, -bound, bound)
        b = jax.random.uniform(kb, (f_out,), jnp.float32, -bound, bound)
        params.append((w, b))
    return params


def reference(x, params, activation):
    hi = jax.lax.Precision.HIGHEST
    h = x
    for (w, b) in params[:-1]:
        h = _apply_activation(jnp.dot(h, w.T, precision=hi) + b, activation)
    w, b = params[-1]
    return jnp.dot(h, w.T, precision=hi) + b


if __name__ == "__main__":
    # Spec analogous to: {'in_dim': 32, 'hidden_layers': [64, 48], 'out_dim': 16,
    #                     'activation': 'relu'}
    spec = {"in_dim": 32, "hidden_layers": [64, 48], "out_dim": 16,
            "activation": "relu"}

    key = jax.random.PRNGKey(0)
    key, kx = jax.random.split(key)
    params = init_params(key, spec["in_dim"], spec["hidden_layers"], spec["out_dim"])

    # Main check: multi-step grid (>=2 steps -> both v7x TCs busy), lane-dense
    # (B/8, 128) output slab, no ragged tile.
    B = 512
    x = jax.random.normal(kx, (B, spec["in_dim"]), jnp.float32)
    ref = reference(x, params, spec["activation"])
    out = jax.block_until_ready(feedforward(x, params, spec["activation"]))
    assert out.shape == (B, spec["out_dim"])
    assert jnp.allclose(out, ref, atol=5e-4, rtol=5e-4), "f32 mismatch vs reference"

    # Tiny-batch path (packed block == full array, grid of 1).
    out_small = jax.block_until_ready(feedforward(x[:8], params, spec["activation"]))
    assert jnp.allclose(out_small, ref[:8], atol=5e-4, rtol=5e-4), "small-batch mismatch"

    # Ragged batch (B not a multiple of the group factor) + elu activation:
    # exercises the zero-padding path (no OOB rows through expm1).
    ref_elu = reference(x[:37], params, "elu")
    out_elu = jax.block_until_ready(feedforward(x[:37], params, "elu"))
    assert out_elu.shape == (37, spec["out_dim"])
    assert jnp.allclose(out_elu, ref_elu, atol=5e-4, rtol=5e-4), "elu/ragged mismatch"

    print("KERNEL_OK")
</pallas_src>

<mosaic_0001>
module attributes {stable_mosaic.version = 11 : i64} {
  func.func @_ff_kernel(%arg0: i32, %arg1: memref<32x256xf32, #tpu.memory_space<vmem>>, %arg2: memref<256x512xf32, #tpu.memory_space<vmem>>, %arg3: memref<1x512xf32, #tpu.memory_space<vmem>>, %arg4: memref<512x384xf32, #tpu.memory_space<vmem>>, %arg5: memref<1x384xf32, #tpu.memory_space<vmem>>, %arg6: memref<384x128xf32, #tpu.memory_space<vmem>>, %arg7: memref<1x128xf32, #tpu.memory_space<vmem>>, %arg8: memref<32x128xf32, #tpu.memory_space<vmem>>) attributes {dimension_semantics = [#tpu.dimension_semantics<parallel>], iteration_bounds = array<i64: 2>, scalar_prefetch = 0 : i64, scratch_operands = 0 : i64, tpu.core_type = #tpu.core_type<tc>, window_params = [{transform_indices = @transform_0, window_bounds = array<i64: 32, 256>}, {pipeline_mode = #tpu.pipeline_mode<synchronous>, transform_indices = @transform_1, window_bounds = array<i64: 256, 512>}, {pipeline_mode = #tpu.pipeline_mode<synchronous>, transform_indices = @transform_2, window_bounds = array<i64: 1, 512>}, {pipeline_mode = #tpu.pipeline_mode<synchronous>, transform_indices = @transform_3, window_bounds = array<i64: 512, 384>}, {pipeline_mode = #tpu.pipeline_mode<synchronous>, transform_indices = @transform_4, window_bounds = array<i64: 1, 384>}, {pipeline_mode = #tpu.pipeline_mode<synchronous>, transform_indices = @transform_5, window_bounds = array<i64: 384, 128>}, {pipeline_mode = #tpu.pipeline_mode<synchronous>, transform_indices = @transform_6, window_bounds = array<i64: 1, 128>}, {transform_indices = @transform_7, window_bounds = array<i64: 32, 128>}]} {
    %c0 = arith.constant 0 : index
    %c0_0 = arith.constant 0 : index
    %0 = vector.load %arg1[%c0, %c0_0] : memref<32x256xf32, #tpu.memory_space<vmem>>, vector<32x256xf32>
    %c0_1 = arith.constant 0 : index
    %c0_2 = arith.constant 0 : index
    %1 = vector.load %arg2[%c0_1, %c0_2] : memref<256x512xf32, #tpu.memory_space<vmem>>, vector<256x512xf32>
    %c0_3 = arith.constant 0 : index
    %c0_4 = arith.constant 0 : index
    %2 = vector.load %arg3[%c0_3, %c0_4] : memref<1x512xf32, #tpu.memory_space<vmem>>, vector<1x512xf32>
    %cst = arith.constant dense<0.000000e+00> : vector<32x512xf32>
    %3 = tpu.matmul %0, %1, %cst {dimension_numbers = #tpu.dot_dimension_numbers<[1], [0], [0], [1], [0, 0, 1, 1], [], []>} : vector<32x256xf32>, vector<256x512xf32>, vector<32x512xf32> -> vector<32x512xf32>
    %4 = vector.broadcast %2 : vector<1x512xf32> to vector<32x512xf32>
    %5 = arith.addf %3, %4 : vector<32x512xf32>
    %cst_5 = arith.constant 0.000000e+00 : f32
    %6 = vector.broadcast %cst_5 : f32 to vector<32x512xf32>
    %7 = arith.maximumf %5, %6 : vector<32x512xf32>
    %c0_6 = arith.constant 0 : index
    %c0_7 = arith.constant 0 : index
    %8 = vector.load %arg4[%c0_6, %c0_7] : memref<512x384xf32, #tpu.memory_space<vmem>>, vector<512x384xf32>
    %c0_8 = arith.constant 0 : index
    %c0_9 = arith.constant 0 : index
    %9 = vector.load %arg5[%c0_8, %c0_9] : memref<1x384xf32, #tpu.memory_space<vmem>>, vector<1x384xf32>
    %cst_10 = arith.constant dense<0.000000e+00> : vector<32x384xf32>
    %10 = tpu.matmul %7, %8, %cst_10 {dimension_numbers = #tpu.dot_dimension_numbers<[1], [0], [0], [1], [0, 0, 1, 1], [], []>} : vector<32x512xf32>, vector<512x384xf32>, vector<32x384xf32> -> vector<32x384xf32>
    %11 = vector.broadcast %9 : vector<1x384xf32> to vector<32x384xf32>
    %12 = arith.addf %10, %11 : vector<32x384xf32>
    %cst_11 = arith.constant 0.000000e+00 : f32
    %13 = vector.broadcast %cst_11 : f32 to vector<32x384xf32>
    %14 = arith.maximumf %12, %13 : vector<32x384xf32>
    %c0_12 = arith.constant 0 : index
    %c0_13 = arith.constant 0 : index
    %15 = vector.load %arg6[%c0_12, %c0_13] : memref<384x128xf32, #tpu.memory_space<vmem>>, vector<384x128xf32>
    %c0_14 = arith.constant 0 : index
    %c0_15 = arith.constant 0 : index
    %16 = vector.load %arg7[%c0_14, %c0_15] : memref<1x128xf32, #tpu.memory_space<vmem>>, vector<1x128xf32>
    %cst_16 = arith.constant dense<0.000000e+00> : vector<32x128xf32>
    %17 = tpu.matmul %14, %15, %cst_16 {dimension_numbers = #tpu.dot_dimension_numbers<[1], [0], [0], [1], [0, 0, 1, 1], [], []>} : vector<32x384xf32>, vector<384x128xf32>, vector<32x128xf32> -> vector<32x128xf32>
    %18 = vector.broadcast %16 : vector<1x128xf32> to vector<32x128xf32>
    %19 = arith.addf %17, %18 : vector<32x128xf32>
    %c0_17 = arith.constant 0 : index
    %c0_18 = arith.constant 0 : index
    %20 = vector.load %arg8[%c0_17, %c0_18] : memref<32x128xf32, #tpu.memory_space<vmem>>, vector<32x128xf32>
    tpu.vector_store %arg8[%c0_17, %c0_18], %19 {strides = array<i32>} : memref<32x128xf32, #tpu.memory_space<vmem>>, vector<32x128xf32>,
    return
  }
  func.func @transform_0(%arg0: i32) -> (i32, i32) {
    %c0_i32 = arith.constant 0 : i32
    %c0_i32_0 = arith.constant 0 : i32
    return %arg0, %c0_i32 : i32, i32
  }
  func.func @transform_1(%arg0: i32) -> (i32, i32) {
    %c0_i32 = arith.constant 0 : i32
    %c0_i32_0 = arith.constant 0 : i32
    %c0_i32_1 = arith.constant 0 : i32
    return %c0_i32, %c0_i32_0 : i32, i32
  }
  func.func @transform_2(%arg0: i32) -> (i32, i32) {
    %c0_i32 = arith.constant 0 : i32
    %c0_i32_0 = arith.constant 0 : i32
    %c0_i32_1 = arith.constant 0 : i32
    return %c0_i32, %c0_i32_0 : i32, i32
  }
  func.func @transform_3(%arg0: i32) -> (i32, i32) {
    %c0_i32 = arith.constant 0 : i32
    %c0_i32_0 = arith.constant 0 : i32
    %c0_i32_1 = arith.constant 0 : i32
    return %c0_i32, %c0_i32_0 : i32, i32
  }
  func.func @transform_4(%arg0: i32) -> (i32, i32) {
    %c0_i32 = arith.constant 0 : i32
    %c0_i32_0 = arith.constant 0 : i32
    %c0_i32_1 = arith.constant 0 : i32
    return %c0_i32, %c0_i32_0 : i32, i32
  }
  func.func @transform_5(%arg0: i32) -> (i32, i32) {
    %c0_i32 = arith.constant 0 : i32
    %c0_i32_0 = arith.constant 0 : i32
    %c0_i32_1 = arith.constant 0 : i32
    return %c0_i32, %c0_i32_0 : i32, i32
  }
  func.func @transform_6(%arg0: i32) -> (i32, i32) {
    %c0_i32 = arith.constant 0 : i32
    %c0_i32_0 = arith.constant 0 : i32
    %c0_i32_1 = arith.constant 0 : i32
    return %c0_i32, %c0_i32_0 : i32, i32
  }
  func.func @transform_7(%arg0: i32) -> (i32, i32) {
    %c0_i32 = arith.constant 0 : i32
    %c0_i32_0 = arith.constant 0 : i32
    return %arg0, %c0_i32 : i32, i32
  }
}

</mosaic_0001>

<llo_original>
// kernel: tpu_custom_call.1
$region0: #{tpu_custom_call.1}
  #allocation0 [shape = 'u32[]', space=smem, size = 0x4, offset = 0x4, fixed_abs, tag = 'smem constant byte address 0x4 - core index']
  #allocation1 [shape = 'u32[144,128]{1,0:T(1,128)}', space=vmem, size = 0x12000, scoped, tag = 'internal scratch']
  %s0 = inlined_call_operand.hbm [shape: f32[64,256], index: 0, kind: input, shape index: {}]
  %s1 = inlined_call_operand.hbm [shape: f32[256,512], index: 1, kind: input, shape index: {}]
  %s2 = inlined_call_operand.vmem [shape: f32[1,512], index: 2, kind: input, shape index: {}]
  %s3 = inlined_call_operand.hbm [shape: f32[512,384], index: 3, kind: input, shape index: {}]
  %s4 = inlined_call_operand.vmem [shape: f32[1,384], index: 4, kind: input, shape index: {}]
  %s5 = inlined_call_operand.hbm [shape: f32[384,128], index: 5, kind: input, shape index: {}]
  %s6 = inlined_call_operand.vmem [shape: f32[1,128], index: 6, kind: input, shape index: {}]
  %s7 = inlined_call_operand.hbm [shape: f32[64,128], index: 7, kind: output, shape index: {}]
  %s8 = sld [smem:[#allocation0]]
  $region77: #{tpu_custom_call.1} parent=0
    _
  %s10 = ssub.s32 1, %s8
  %s11 = scalar_select 0, %s10, %s8
  $region1: #{tpu_custom_call.1} parent=0
    #allocation2 [shape = 'u8[65536]{0}', space=vmem, size = 0x10000, scoped, tag = 'input window, operand 0']
    #allocation3 [shape = 's32[2]{0}', space=sflag, size = 0x8, scoped, tag = 'scoped memory for tpu_custom_call.1']
    #allocation4 [shape = 's32[2]{0}', space=sflag, size = 0x8, scoped, tag = 'scoped memory for tpu_custom_call.1']
    #allocation5 [shape = 'u8[524288]{0}', space=vmem, size = 0x80000, scoped, tag = 'input window, operand 1, single buffered']
    #allocation6 [shape = 's32[1]{0}', space=sflag, size = 0x4, scoped, tag = 'scoped memory for tpu_custom_call.1']
    #allocation7 [shape = 'u8[786432]{0}', space=vmem, size = 0xc0000, scoped, tag = 'input window, operand 3, single buffered']
    #allocation8 [shape = 'u8[196608]{0}', space=vmem, size = 0x30000, scoped, tag = 'input window, operand 5, single buffered']
    #allocation9 [shape = 's32[1]{0}', space=sflag, size = 0x4, scoped, tag = 'scoped memory for tpu_custom_call.1']
    #allocation10 [shape = 'u8[32768]{0}', space=vmem, size = 0x8000, scoped, tag = 'output window, operand 0']
    %12 = vsyncpa [#allocation3], 0
    %s13 = scalar_lea.sflag [#allocation3], 1
    %14 = vsyncpa %s13, 0
    %15 = vsyncpa [#allocation6], 0
    %16 = vsyncpa [#allocation9], 0
    %17 = vsyncpa [#allocation4], 0
    %s18 = scalar_lea.sflag [#allocation4], 1
    %19 = vsyncpa %s18, 0
    loop: start=0, step=1, limit=4
    $region2: #{tpu_custom_call.1} parent=1 // loop_pre_header
      _
    $region3: #{tpu_custom_call.1} parent=1 // loop_header
      %s21 = sphi 0, %s25
      %p22 = scmp.ge.s32.totalorder %s21, 4
      %s31 = sphi 0, %s33
      %s34 = sphi 0, %s31
      %s35 = sphi 0, %s34
      %s51 = sphi 0, %s35
      %s55 = sphi 0, %s55
      %s57 = sphi 0, %s55
      %s58 = sphi 0, %s57
      %s72 = sphi 0, %s58
      %s76 = sphi 0, %s76
      %s78 = sphi 0, %s76
      %s79 = sphi 0, %s78
      %s93 = sphi 0, %s79
      %s97 = sphi 0, %s97
      %s99 = sphi 0, %s97
      %s100 = sphi 0, %s99
      %s114 = sphi 0, %s100
      %s118 = sphi 0, %s118
      %s120 = sphi 0, %s118
      %s121 = sphi 0, %s120
      %s135 = sphi 0, %s121
      %s139 = sphi 0, %s139
      %s141 = sphi 0, %s139
      %s142 = sphi 0, %s141
      %s156 = sphi 0, %s142
      %s160 = sphi 0, %s160
      %s162 = sphi 0, %s160
      %s163 = sphi 0, %s162
      %s177 = sphi 0, %s163
      %s183 = sphi 0, %s185
      %s186 = sphi 0, %s183
      %s187 = sphi 0, %s186
      %s203 = sphi 0, %s187
    $region4: #{tpu_custom_call.1} parent=1 // loop_header_branch
      %24 = sbr.rel (%p22) target = $region8
    $region5: #{tpu_custom_call.1} parent=1 // loop_body
      %s26 = ssub.s32 %s21, 1
      %s27 = ssub.s32 %s21, 2
      %s28 = sadd.s32 %s21, 1
      %s29 = ssub.s32 %s21, %s28
      %p30 = scmp.eq.s32.totalorder %s29, 0
      %s32 = sadd.s32 %s31, 1
      %s33 = scalar_select %p30, %s31, %s32
      %p36 = pneg %p30
      %p37 = scmp.eq.s32.totalorder %s21, 1
      %p38 = por %p36, %p37
      %p39 = scmp.ne.s32.totalorder %s31, %s34
      %p40 = scmp.eq.s32.totalorder %s21, 0
      %p41 = por %p39, %p40
      %p42 = scmp.ne.s32.totalorder %s31, %s34
      %p43 = scmp.eq.s32.totalorder %s26, 1
      %p44 = por %p42, %p43
      %p45 = scmp.ne.s32.totalorder %s34, %s35
      %p46 = scmp.eq.s32.totalorder %s26, 0
      %p47 = por %p45, %p46
      %p48 = scmp.ne.s32.totalorder %s34, %s35
      %p49 = scmp.eq.s32.totalorder %s27, 1
      %p50 = por %p48, %p49
      %p52 = scmp.ne.s32.totalorder %s35, %s51
      %p53 = scmp.eq.s32.totalorder %s27, 0
      %p54 = por %p52, %p53
      %s56 = sadd.s32 %s55, 1
      %p59 = scmp.eq.s32.totalorder %s21, 1
      %p60 = scmp.ne.s32.totalorder %s55, %s57
      %p61 = scmp.eq.s32.totalorder %s21, 0
      %p62 = por %p60, %p61
      %p63 = scmp.ne.s32.totalorder %s55, %s57
      %p64 = scmp.eq.s32.totalorder %s26, 1
      %p65 = por %p63, %p64
      %p66 = scmp.ne.s32.totalorder %s57, %s58
      %p67 = scmp.eq.s32.totalorder %s26, 0
      %p68 = por %p66, %p67
      %p69 = scmp.ne.s32.totalorder %s57, %s58
      %p70 = scmp.eq.s32.totalorder %s27, 1
      %p71 = por %p69, %p70
      %p73 = scmp.ne.s32.totalorder %s58, %s72
      %p74 = scmp.eq.s32.totalorder %s27, 0
      %p75 = por %p73, %p74
      %s77 = sadd.s32 %s76, 1
      %p80 = scmp.eq.s32.totalorder %s21, 1
      %p81 = scmp.ne.s32.totalorder %s76, %s78
      %p82 = scmp.eq.s32.totalorder %s21, 0
      %p83 = por %p81, %p82
      %p84 = scmp.ne.s32.totalorder %s76, %s78
      %p85 = scmp.eq.s32.totalorder %s26, 1
      %p86 = por %p84, %p85
      %p87 = scmp.ne.s32.totalorder %s78, %s79
      %p88 = scmp.eq.s32.totalorder %s26, 0
      %p89 = por %p87, %p88
      %p90 = scmp.ne.s32.totalorder %s78, %s79
      %p91 = scmp.eq.s32.totalorder %s27, 1
      %p92 = por %p90, %p91
      %p94 = scmp.ne.s32.totalorder %s79, %s93
      %p95 = scmp.eq.s32.totalorder %s27, 0
      %p96 = por %p94, %p95
      %s98 = sadd.s32 %s97, 1
      %p101 = scmp.eq.s32.totalorder %s21, 1
      %p102 = scmp.ne.s32.totalorder %s97, %s99
      %p103 = scmp.eq.s32.totalorder %s21, 0
      %p104 = por %p102, %p103
      %p105 = scmp.ne.s32.totalorder %s97, %s99
      %p106 = scmp.eq.s32.totalorder %s26, 1
      %p107 = por %p105, %p106
      %p108 = scmp.ne.s32.totalorder %s99, %s100
      %p109 = scmp.eq.s32.totalorder %s26, 0
      %p110 = por %p108, %p109
      %p111 = scmp.ne.s32.totalorder %s99, %s100
      %p112 = scmp.eq.s32.totalorder %s27, 1
      %p113 = por %p111, %p112
      %p115 = scmp.ne.s32.totalorder %s100, %s114
      %p116 = scmp.eq.s32.totalorder %s27, 0
      %p117 = por %p115, %p116
      %s119 = sadd.s32 %s118, 1
      %p122 = scmp.eq.s32.totalorder %s21, 1
      %p123 = scmp.ne.s32.totalorder %s118, %s120
      %p124 = scmp.eq.s32.totalorder %s21, 0
      %p125 = por %p123, %p124
      %p126 = scmp.ne.s32.totalorder %s118, %s120
      %p127 = scmp.eq.s32.totalorder %s26, 1
      %p128 = por %p126, %p127
      %p129 = scmp.ne.s32.totalorder %s120, %s121
      %p130 = scmp.eq.s32.totalorder %s26, 0
      %p131 = por %p129, %p130
      %p132 = scmp.ne.s32.totalorder %s120, %s121
      %p133 = scmp.eq.s32.totalorder %s27, 1
      %p134 = por %p132, %p133
      %p136 = scmp.ne.s32.totalorder %s121, %s135
      %p137 = scmp.eq.s32.totalorder %s27, 0
      %p138 = por %p136, %p137
      %s140 = sadd.s32 %s139, 1
      %p143 = scmp.eq.s32.totalorder %s21, 1
      %p144 = scmp.ne.s32.totalorder %s139, %s141
      %p145 = scmp.eq.s32.totalorder %s21, 0
      %p146 = por %p144, %p145
      %p147 = scmp.ne.s32.totalorder %s139, %s141
      %p148 = scmp.eq.s32.totalorder %s26, 1
      %p149 = por %p147, %p148
      %p150 = scmp.ne.s32.totalorder %s141, %s142
      %p151 = scmp.eq.s32.totalorder %s26, 0
      %p152 = por %p150, %p151
      %p153 = scmp.ne.s32.totalorder %s141, %s142
      %p154 = scmp.eq.s32.totalorder %s27, 1
      %p155 = por %p153, %p154
      %p157 = scmp.ne.s32.totalorder %s142, %s156
      %p158 = scmp.eq.s32.totalorder %s27, 0
      %p159 = por %p157, %p158
      %s161 = sadd.s32 %s160, 1
      %p164 = scmp.eq.s32.totalorder %s21, 1
      %p165 = scmp.ne.s32.totalorder %s160, %s162
      %p166 = scmp.eq.s32.totalorder %s21, 0
      %p167 = por %p165, %p166
      %p168 = scmp.ne.s32.totalorder %s160, %s162
      %p169 = scmp.eq.s32.totalorder %s26, 1
      %p170 = por %p168, %p169
      %p171 = scmp.ne.s32.totalorder %s162, %s163
      %p172 = scmp.eq.s32.totalorder %s26, 0
      %p173 = por %p171, %p172
      %p174 = scmp.ne.s32.totalorder %s162, %s163
      %p175 = scmp.eq.s32.totalorder %s27, 1
      %p176 = por %p174, %p175
      %p178 = scmp.ne.s32.totalorder %s163, %s177
      %p179 = scmp.eq.s32.totalorder %s27, 0
      %p180 = por %p178, %p179
      %s181 = ssub.s32 %s21, %s28
      %p182 = scmp.eq.s32.totalorder %s181, 0
      %s184 = sadd.s32 %s183, 1
      %s185 = scalar_select %p182, %s183, %s184
      %p188 = pneg %p182
      %p189 = scmp.eq.s32.totalorder %s21, 1
      %p190 = por %p188, %p189
      %p191 = scmp.ne.s32.totalorder %s183, %s186
      %p192 = scmp.eq.s32.totalorder %s21, 0
      %p193 = por %p191, %p192
      %p194 = scmp.ne.s32.totalorder %s183, %s186
      %p195 = scmp.eq.s32.totalorder %s26, 1
      %p196 = por %p194, %p195
      %p197 = scmp.ne.s32.totalorder %s186, %s187
      %p198 = scmp.eq.s32.totalorder %s26, 0
      %p199 = por %p197, %p198
      %p200 = scmp.ne.s32.totalorder %s186, %s187
      %p201 = scmp.eq.s32.totalorder %s27, 1
      %p202 = por %p200, %p201
      %p204 = scmp.ne.s32.totalorder %s187, %s203
      %p205 = scmp.eq.s32.totalorder %s27, 0
      %p206 = por %p204, %p205
      %p207 = scmp.le.s32.totalorder 1, %s21
      %p208 = scmp.lt.s32.totalorder %s21, 3
      %p209 = pnand %p207, %p208
      %p210 = pneg %p209
      // Predicated region
      $region9: #{tpu_custom_call.1} parent=5 // pred_check
        _
      $region10: #{tpu_custom_call.1} parent=5 // pred_check_branch
        %212 = sbr.rel (%p209) target = $region12
      $region11: #{tpu_custom_call.1} parent=5 // pred_region
        %s213 = ssub.s32 %s21, 1
        // Predicated region
        $region13: #{tpu_custom_call.1} parent=11 // pred_check
          %p214 = pneg %p68
        $region14: #{tpu_custom_call.1} parent=11 // pred_check_branch
          %216 = sbr.rel (%p214) target = $region16
        $region15: #{tpu_custom_call.1} parent=11 // pred_region
          %s218 = ssub.s32 16384, 16384
          %219 = vsyncadd [#allocation6], %s218
          %s220 = sshll.u32 [#allocation5], 4
          %s221 = int_to_ptr.vmem [resolvable:$true] %s220
          %226 = dma.hbm_to_vmem [thread:$0]  %s1, 16384, %s221, [#allocation6], 512, 512, 32
        $region16: #{tpu_custom_call.1} parent=11 // pred_fallthru
          _
        // Predicated region
        $region17: #{tpu_custom_call.1} parent=11 // pred_check
          %p227 = pneg %p89
        $region18: #{tpu_custom_call.1} parent=11 // pred_check_branch
          %229 = sbr.rel (%p227) target = $region20
        $region19: #{tpu_custom_call.1} parent=11 // pred_region
          _
        $region20: #{tpu_custom_call.1} parent=11 // pred_fallthru
          _
        // Predicated region
        $region21: #{tpu_custom_call.1} parent=11 // pred_check
          %p230 = pneg %p110
        $region22: #{tpu_custom_call.1} parent=11 // pred_check_branch
          %232 = sbr.rel (%p230) target = $region24
        $region23: #{tpu_custom_call.1} parent=11 // pred_region
          %s234 = ssub.s32 24576, 24576
          %235 = vsyncadd [#allocation6], %s234
          %s236 = sshll.u32 [#allocation7], 4
          %s237 = int_to_ptr.vmem [resolvable:$true] %s236
          %242 = dma.hbm_to_vmem [thread:$0]  %s3, 24576, %s237, [#allocation6], 384, 384, 24
        $region24: #{tpu_custom_call.1} parent=11 // pred_fallthru
          _
        // Predicated region
        $region25: #{tpu_custom_call.1} parent=11 // pred_check
          %p243 = pneg %p131
        $region26: #{tpu_custom_call.1} parent=11 // pred_check_branch
          %245 = sbr.rel (%p243) target = $region28
        $region27: #{tpu_custom_call.1} parent=11 // pred_region
          _
        $region28: #{tpu_custom_call.1} parent=11 // pred_fallthru
          _
        // Predicated region
        $region29: #{tpu_custom_call.1} parent=11 // pred_check
          %p246 = pneg %p152
        $region30: #{tpu_custom_call.1} parent=11 // pred_check_branch
          %248 = sbr.rel (%p246) target = $region32
        $region31: #{tpu_custom_call.1} parent=11 // pred_region
          %s250 = ssub.s32 6144, 6144
          %251 = vsyncadd [#allocation9], %s250
          %s252 = sshll.u32 [#allocation8], 4
          %s253 = int_to_ptr.vmem [resolvable:$true] %s252
          %258 = dma.hbm_to_vmem [thread:$0]  %s5, 6144, %s253, [#allocation9], 128, 128, 8
        $region32: #{tpu_custom_call.1} parent=11 // pred_fallthru
          _
        // Predicated region
        $region33: #{tpu_custom_call.1} parent=11 // pred_check
          %p259 = pneg %p173
        $region34: #{tpu_custom_call.1} parent=11 // pred_check_branch
          %261 = sbr.rel (%p259) target = $region36
        $region35: #{tpu_custom_call.1} parent=11 // pred_region
          _
        $region36: #{tpu_custom_call.1} parent=11 // pred_fallthru
          _
      $region12: #{tpu_custom_call.1} parent=5 // pred_fallthru
        _
      %p262 = scmp.lt.s32.totalorder %s21, 2
      // Predicated region
      $region37: #{tpu_custom_call.1} parent=5 // pred_check
        %p263 = pneg %p262
      $region38: #{tpu_custom_call.1} parent=5 // pred_check_branch
        %265 = sbr.rel (%p263) target = $region40
      $region39: #{tpu_custom_call.1} parent=5 // pred_region
        // Predicated region
        $region41: #{tpu_custom_call.1} parent=39 // pred_check
          %p266 = pneg %p41
        $region42: #{tpu_custom_call.1} parent=39 // pred_check_branch
          %268 = sbr.rel (%p266) target = $region44
        $region43: #{tpu_custom_call.1} parent=39 // pred_region
          %s269 = sand.u32 %s31, 1
          %s270 = scalar_lea.sflag [#allocation3], %s269
          %s271 = sand.u32 %s31, 1
          %s272 = smul.addr %s271, 64
          %s273 = scalar_lea.vmem [#allocation2], %s272
          %s274 = smul.u32 4, %s21
          %s276 = ssub.s32 1024, 1024
          %277 = vsyncadd %s270, %s276
          %s278 = smul.addr %s274, 2
          %s279 = smul.addr %s278, 128
          %s280 = scalar_lea.hbm %s0, %s279
          %s281 = sshll.u32 %s273, 4
          %s282 = int_to_ptr.vmem [resolvable:$true] %s281
          %287 = dma.hbm_to_vmem [thread:$0]  %s280, 1024, %s282, %s270, 256, 256, 16
        $region44: #{tpu_custom_call.1} parent=39 // pred_fallthru
          _
      $region40: #{tpu_custom_call.1} parent=5 // pred_fallthru
        _
      %p288 = scmp.le.s32.totalorder 1, %s21
      %p289 = scmp.lt.s32.totalorder %s21, 3
      %p290 = pnand %p288, %p289
      %p291 = pneg %p290
      // Predicated region
      $region45: #{tpu_custom_call.1} parent=5 // pred_check
        _
      $region46: #{tpu_custom_call.1} parent=5 // pred_check_branch
        %293 = sbr.rel (%p290) target = $region48
      $region47: #{tpu_custom_call.1} parent=5 // pred_region
        %s294 = ssub.s32 %s21, 1
        %s295 = sand.u32 %s34, 1
        %s296 = scalar_lea.sflag [#allocation3], %s295
        %s297 = sand.u32 %s34, 1
        %s298 = smul.addr %s297, 64
        %s299 = scalar_lea.vmem [#allocation2], %s298
        // Predicated region
        $region49: #{tpu_custom_call.1} parent=47 // pred_check
          %p300 = pneg %p47
        $region50: #{tpu_custom_call.1} parent=47 // pred_check_branch
          %302 = sbr.rel (%p300) target = $region52
        $region51: #{tpu_custom_call.1} parent=47 // pred_region
          %303 = dma.done %s296, 1024
        $region52: #{tpu_custom_call.1} parent=47 // pred_fallthru
          _
        // Predicated region
        $region53: #{tpu_custom_call.1} parent=47 // pred_check
          %p304 = pneg %p68
        $region54: #{tpu_custom_call.1} parent=47 // pred_check_branch
          %306 = sbr.rel (%p304) target = $region56
        $region55: #{tpu_custom_call.1} parent=47 // pred_region
          %307 = dma.done [#allocation6], 16384
        $region56: #{tpu_custom_call.1} parent=47 // pred_fallthru
          _
        // Predicated region
        $region57: #{tpu_custom_call.1} parent=47 // pred_check
          %p308 = pneg %p110
        $region58: #{tpu_custom_call.1} parent=47 // pred_check_branch
          %310 = sbr.rel (%p308) target = $region60
        $region59: #{tpu_custom_call.1} parent=47 // pred_region
          %311 = dma.done [#allocation6], 24576
        $region60: #{tpu_custom_call.1} parent=47 // pred_fallthru
          _
        // Predicated region
        $region61: #{tpu_custom_call.1} parent=47 // pred_check
          %p312 = pneg %p152
        $region62: #{tpu_custom_call.1} parent=47 // pred_check_branch
          %314 = sbr.rel (%p312) target = $region64
        $region63: #{tpu_custom_call.1} parent=47 // pred_region
          %315 = dma.done [#allocation9], 6144
        $region64: #{tpu_custom_call.1} parent=47 // pred_fallthru
          _
        %s316 = sand.u32 %s34, 1
        %s317 = scalar_lea.sflag [#allocation3], %s316
        %s318 = sand.u32 %s34, 1
        %s319 = smul.addr %s318, 64
        %s320 = scalar_lea.vmem [#allocation2], %s319
        %p321 = pneg %p47
        %p322 = pneg %p44
        %p323 = pneg %p68
        %p324 = pneg %p65
        %p325 = pneg %p89
        %p326 = pneg %p86
        %p327 = pneg %p110
        %p328 = pneg %p107
        %p329 = pneg %p131
        %p330 = pneg %p128
        %p331 = pneg %p152
        %p332 = pneg %p149
        %p333 = pneg %p173
        %p334 = pneg %p170
        %p335 = pneg %p199
        %p336 = pneg %p196
        %s337 = sand.u32 %s186, 1
        %s338 = scalar_lea.sflag [#allocation4], %s337
        %s339 = sand.u32 %s186, 1
        %s340 = smul.addr %s339, 32
        %s341 = scalar_lea.vmem [#allocation10], %s340
        %s342 = smul.u32 4, %s26
        %s343 = smul.u32 4, %s26
        %v344 = vld [vmem:[%s299] sm:$0xff]
        %v345 = vld [vmem:[%s299 + $0x8] sm:$0xff]
        %v346 = vld [vmem:[%s299 + $0x10] sm:$0xff]
        %v347 = vld [vmem:[%s299 + $0x18] sm:$0xff]
        %v348 = vld [vmem:[%s299 + $0x20] sm:$0xff]
        %v349 = vld [vmem:[%s299 + $0x28] sm:$0xff]
        %v350 = vld [vmem:[%s299 + $0x30] sm:$0xff]
        %v351 = vld [vmem:[%s299 + $0x38] sm:$0xff]
        %v352 = vld [vmem:[#allocation5] sm:$0xff]
        %v353 = vld [vmem:[#allocation5 + $0x8] sm:$0xff]
        %v354 = vld [vmem:[#allocation5 + $0x10] sm:$0xff]
        %v355 = vld [vmem:[#allocation5 + $0x18] sm:$0xff]
        %v356 = vld [vmem:[#allocation5 + $0x20] sm:$0xff]
        %v357 = vld [vmem:[#allocation5 + $0x28] sm:$0xff]
        %v358 = vld [vmem:[#allocation5 + $0x30] sm:$0xff]
        %v359 = vld [vmem:[#allocation5 + $0x38] sm:$0xff]
        %v360 = vld [vmem:[#allocation5 + $0x40] sm:$0xff]
        %v361 = vld [vmem:[#allocation5 + $0x48] sm:$0xff]
        %v362 = vld [vmem:[#allocation5 + $0x50] sm:$0xff]
        %v363 = vld [vmem:[#allocation5 + $0x58] sm:$0xff]
        %v364 = vld [vmem:[#allocation5 + $0x60] sm:$0xff]
        %v365 = vld [vmem:[#allocation5 + $0x68] sm:$0xff]
        %v366 = vld [vmem:[#allocation5 + $0x70] sm:$0xff]
        %v367 = vld [vmem:[#allocation5 + $0x78] sm:$0xff]
        %v368 = vld [vmem:[#allocation5 + $0x80] sm:$0xff]
        %v369 = vld [vmem:[#allocation5 + $0x88] sm:$0xff]
        %v370 = vld [vmem:[#allocation5 + $0x90] sm:$0xff]
        %v371 = vld [vmem:[#allocation5 + $0x98] sm:$0xff]
        %v372 = vld [vmem:[#allocation5 + $0xa0] sm:$0xff]
        %v373 = vld [vmem:[#allocation5 + $0xa8] sm:$0xff]
        %v374 = vld [vmem:[#allocation5 + $0xb0] sm:$0xff]
        %v375 = vld [vmem:[#allocation5 + $0xb8] sm:$0xff]
        %v376 = vld [vmem:[#allocation5 + $0xc0] sm:$0xff]
        %v377 = vld [vmem:[#allocation5 + $0xc8] sm:$0xff]
        %v378 = vld [vmem:[#allocation5 + $0xd0] sm:$0xff]
        %v379 = vld [vmem:[#allocation5 + $0xd8] sm:$0xff]
        %v380 = vld [vmem:[#allocation5 + $0xe0] sm:$0xff]
        %v381 = vld [vmem:[#allocation5 + $0xe8] sm:$0xff]
        %v382 = vld [vmem:[#allocation5 + $0xf0] sm:$0xff]
        %v383 = vld [vmem:[#allocation5 + $0xf8] sm:$0xff]
        %v384 = vld [vmem:[#allocation5 + $0x100] sm:$0xff]
        %v385 = vld [vmem:[#allocation5 + $0x108] sm:$0xff]
        %v386 = vld [vmem:[#allocation5 + $0x110] sm:$0xff]
        %v387 = vld [vmem:[#allocation5 + $0x118] sm:$0xff]
        %v388 = vld [vmem:[#allocation5 + $0x120] sm:$0xff]
        %v389 = vld [vmem:[#allocation5 + $0x128] sm:$0xff]
        %v390 = vld [vmem:[#allocation5 + $0x130] sm:$0xff]
        %v391 = vld [vmem:[#allocation5 + $0x138] sm:$0xff]
        %v392 = vld [vmem:[#allocation5 + $0x140] sm:$0xff]
        %v393 = vld [vmem:[#allocation5 + $0x148] sm:$0xff]
        %v394 = vld [vmem:[#allocation5 + $0x150] sm:$0xff]
        %v395 = vld [vmem:[#allocation5 + $0x158] sm:$0xff]
        %v396 = vld [vmem:[#allocation5 + $0x160] sm:$0xff]
        %v397 = vld [vmem:[#allocation5 + $0x168] sm:$0xff]
        %v398 = vld [vmem:[#allocation5 + $0x170] sm:$0xff]
        %v399 = vld [vmem:[#allocation5 + $0x178] sm:$0xff]
        %v400 = vld [vmem:[#allocation5 + $0x180] sm:$0xff]
        %v401 = vld [vmem:[#allocation5 + $0x188] sm:$0xff]
        %v402 = vld [vmem:[#allocation5 + $0x190] sm:$0xff]
        %v403 = vld [vmem:[#allocation5 + $0x198] sm:$0xff]
        %v404 = vld [vmem:[#allocation5 + $0x1a0] sm:$0xff]
        %v405 = vld [vmem:[#allocation5 + $0x1a8] sm:$0xff]
        %v406 = vld [vmem:[#allocation5 + $0x1b0] sm:$0xff]
        %v407 = vld [vmem:[#allocation5 + $0x1b8] sm:$0xff]
        %v408 = vld [vmem:[#allocation5 + $0x1c0] sm:$0xff]
        %v409 = vld [vmem:[#allocation5 + $0x1c8] sm:$0xff]
        %v410 = vld [vmem:[#allocation5 + $0x1d0] sm:$0xff]
        %v411 = vld [vmem:[#allocation5 + $0x1d8] sm:$0xff]
        %v412 = vld [vmem:[#allocation5 + $0x1e0] sm:$0xff]
        %v413 = vld [vmem:[#allocation5 + $0x1e8] sm:$0xff]
        %v414 = vld [vmem:[#allocation5 + $0x1f0] sm:$0xff]
        %v415 = vld [vmem:[#allocation5 + $0x1f8] sm:$0xff]
        %v416 = vld [vmem:[#allocation5 + $0x200] sm:$0xff]
        %v417 = vld [vmem:[#allocation5 + $0x208] sm:$0xff]
        %v418 = vld [vmem:[#allocation5 + $0x210] sm:$0xff]
        %v419 = vld [vmem:[#allocation5 + $0x218] sm:$0xff]
        %v420 = vld [vmem:[#allocation5 + $0x220] sm:$0xff]
        %v421 = vld [vmem:[#allocation5 + $0x228] sm:$0xff]
        %v422 = vld [vmem:[#allocation5 + $0x230] sm:$0xff]
        %v423 = vld [vmem:[#allocation5 + $0x238] sm:$0xff]
        %v424 = vld [vmem:[#allocation5 + $0x240] sm:$0xff]
        %v425 = vld [vmem:[#allocation5 + $0x248] sm:$0xff]
        %v426 = vld [vmem:[#allocation5 + $0x250] sm:$0xff]
        %v427 = vld [vmem:[#allocation5 + $0x258] sm:$0xff]
        %v428 = vld [vmem:[#allocation5 + $0x260] sm:$0xff]
        %v429 = vld [vmem:[#allocation5 + $0x268] sm:$0xff]
        %v430 = vld [vmem:[#allocation5 + $0x270] sm:$0xff]
        %v431 = vld [vmem:[#allocation5 + $0x278] sm:$0xff]
        %v432 = vld [vmem:[#allocation5 + $0x280] sm:$0xff]
        %v433 = vld [vmem:[#allocation5 + $0x288] sm:$0xff]
        %v434 = vld [vmem:[#allocation5 + $0x290] sm:$0xff]
        %v435 = vld [vmem:[#allocation5 + $0x298] sm:$0xff]
        %v436 = vld [vmem:[#allocation5 + $0x2a0] sm:$0xff]
        %v437 = vld [vmem:[#allocation5 + $0x2a8] sm:$0xff]
        %v438 = vld [vmem:[#allocation5 + $0x2b0] sm:$0xff]
        %v439 = vld [vmem:[#allocation5 + $0x2b8] sm:$0xff]
        %v440 = vld [vmem:[#allocation5 + $0x2c0] sm:$0xff]
        %v441 = vld [vmem:[#allocation5 + $0x2c8] sm:$0xff]
        %v442 = vld [vmem:[#allocation5 + $0x2d0] sm:$0xff]
        %v443 = vld [vmem:[#allocation5 + $0x2d8] sm:$0xff]
        %v444 = vld [vmem:[#allocation5 + $0x2e0] sm:$0xff]
        %v445 = vld [vmem:[#allocation5 + $0x2e8] sm:$0xff]
        %v446 = vld [vmem:[#allocation5 + $0x2f0] sm:$0xff]
        %v447 = vld [vmem:[#allocation5 + $0x2f8] sm:$0xff]
        %v448 = vld [vmem:[#allocation5 + $0x300] sm:$0xff]
        %v449 = vld [vmem:[#allocation5 + $0x308] sm:$0xff]
        %v450 = vld [vmem:[#allocation5 + $0x310] sm:$0xff]
        %v451 = vld [vmem:[#allocation5 + $0x318] sm:$0xff]
        %v452 = vld [vmem:[#allocation5 + $0x320] sm:$0xff]
        %v453 = vld [vmem:[#allocation5 + $0x328] sm:$0xff]
        %v454 = vld [vmem:[#allocation5 + $0x330] sm:$0xff]
        %v455 = vld [vmem:[#allocation5 + $0x338] sm:$0xff]
        %v456 = vld [vmem:[#allocation5 + $0x340] sm:$0xff]
        %v457 = vld [vmem:[#allocation5 + $0x348] sm:$0xff]
        %v458 = vld [vmem:[#allocation5 + $0x350] sm:$0xff]
        %v459 = vld [vmem:[#allocation5 + $0x358] sm:$0xff]
        %v460 = vld [vmem:[#allocation5 + $0x360] sm:$0xff]
        %v461 = vld [vmem:[#allocation5 + $0x368] sm:$0xff]
        %v462 = vld [vmem:[#allocation5 + $0x370] sm:$0xff]
        %v463 = vld [vmem:[#allocation5 + $0x378] sm:$0xff]
        %v464 = vld [vmem:[#allocation5 + $0x380] sm:$0xff]
        %v465 = vld [vmem:[#allocation5 + $0x388] sm:$0xff]
        %v466 = vld [vmem:[#allocation5 + $0x390] sm:$0xff]
        %v467 = vld [vmem:[#allocation5 + $0x398] sm:$0xff]
        %v468 = vld [vmem:[#allocation5 + $0x3a0] sm:$0xff]
        %v469 = vld [vmem:[#allocation5 + $0x3a8] sm:$0xff]
        %v470 = vld [vmem:[#allocation5 + $0x3b0] sm:$0xff]
        %v471 = vld [vmem:[#allocation5 + $0x3b8] sm:$0xff]
        %v472 = vld [vmem:[#allocation5 + $0x3c0] sm:$0xff]
        %v473 = vld [vmem:[#allocation5 + $0x3c8] sm:$0xff]
        %v474 = vld [vmem:[#allocation5 + $0x3d0] sm:$0xff]
        %v475 = vld [vmem:[#allocation5 + $0x3d8] sm:$0xff]
        %v476 = vld [vmem:[#allocation5 + $0x3e0] sm:$0xff]
        %v477 = vld [vmem:[#allocation5 + $0x3e8] sm:$0xff]
        %v478 = vld [vmem:[#allocation5 + $0x3f0] sm:$0xff]
        %v479 = vld [vmem:[#allocation5 + $0x3f8] sm:$0xff]
        %v480 = vld [vmem:[%s2] sm:$0xf]
        %v482 = vlaneseq
        %v483 = vshrl.u32 %v482, 7
        %v484 = vsub.s32 0, %v483
        %v485 = vrot.slane %v480, %v484
        %v486 = vlaneseq
        %v487 = vshrl.u32 %v486, 7
        %v488 = vsub.s32 1, %v487
        %v489 = vrot.slane %v480, %v488
        %v490 = vlaneseq
        %v491 = vshrl.u32 %v490, 7
        %v492 = vsub.s32 2, %v491
        %v493 = vrot.slane %v480, %v492
        %v494 = vlaneseq
        %v495 = vshrl.u32 %v494, 7
        %v496 = vsub.s32 3, %v495
        %v497 = vrot.slane %v480, %v496
        %502 = vmatprep.subr.mxu0 %v353
        %503 = vmatpush1.msra.mxu0 %v352
        %504 = vmatprep.subr.mxu0 %v357
        %505 = vmatpush1.msra.mxu0 %v356
        %506 = vmatprep.subr.mxu0 %v361
        %507 = vmatpush1.msra.mxu0 %v360
        %508 = vmatprep.subr.mxu0 %v365
        %509 = vmatpush1.msra.mxu0 %v364
        %510 = vmatprep.subr.mxu0 %v369
        %511 = vmatpush1.msra.mxu0 %v368
        %512 = vmatprep.subr.mxu0 %v373
        %513 = vmatpush1.msra.mxu0 %v372
        %514 = vmatprep.subr.mxu0 %v377
        %515 = vmatpush1.msra.mxu0 %v376
        %516 = vmatprep.subr.mxu0 %v381
        %517 = vmatpush1.msra.mxu0 %v380
        %518 = vmatprep.subr.mxu0 %v385
        %519 = vmatpush1.msra.mxu0 %v384
        %520 = vmatprep.subr.mxu0 %v389
        %521 = vmatpush1.msra.mxu0 %v388
        %522 = vmatprep.subr.mxu0 %v393
        %523 = vmatpush1.msra.mxu0 %v392
        %524 = vmatprep.subr.mxu0 %v397
        %525 = vmatpush1.msra.mxu0 %v396
        %526 = vmatprep.subr.mxu0 %v401
        %527 = vmatpush1.msra.mxu0 %v400
        %528 = vmatprep.subr.mxu0 %v405
        %529 = vmatpush1.msra.mxu0 %v404
        %530 = vmatprep.subr.mxu0 %v409
        %531 = vmatpush1.msra.mxu0 %v408
        %532 = vmatprep.subr.mxu0 %v413
        %533 = vmatpush1.msra.mxu0 %v412
        %534 = vmatprep.subr.mxu0 %v417
        %535 = vmatpush1.msra.mxu0 %v416
        %536 = vmatprep.subr.mxu0 %v421
        %537 = vmatpush1.msra.mxu0 %v420
        %538 = vmatprep.subr.mxu0 %v425
        %539 = vmatpush1.msra.mxu0 %v424
        %540 = vmatprep.subr.mxu0 %v429
        %541 = vmatpush1.msra.mxu0 %v428
        %542 = vmatprep.subr.mxu0 %v433
        %543 = vmatpush1.msra.mxu0 %v432
        %544 = vmatprep.subr.mxu0 %v437
        %545 = vmatpush1.msra.mxu0 %v436
        %546 = vmatprep.subr.mxu0 %v441
        %547 = vmatpush1.msra.mxu0 %v440
        %548 = vmatprep.subr.mxu0 %v445
        %549 = vmatpush1.msra.mxu0 %v444
        %550 = vmatprep.subr.mxu0 %v449
        %551 = vmatpush1.msra.mxu0 %v448
        %552 = vmatprep.subr.mxu0 %v453
        %553 = vmatpush1.msra.mxu0 %v452
        %554 = vmatprep.subr.mxu0 %v457
        %555 = vmatpush1.msra.mxu0 %v456
        %556 = vmatprep.subr.mxu0 %v461
        %557 = vmatpush1.msra.mxu0 %v460
        %558 = vmatprep.subr.mxu0 %v465
        %559 = vmatpush1.msra.mxu0 %v464
        %560 = vmatprep.subr.mxu0 %v469
        %561 = vmatpush1.msra.mxu0 %v468
        %562 = vmatprep.subr.mxu0 %v473
        %563 = vmatpush1.msra.mxu0 %v472
        %564 = vmatprep.subr.mxu0 %v477
        %565 = vmatpush1.msra.mxu0 %v476
        %566 = vmatprep.mubr.f32.mxu0 %v345
        %567 = vmatmul.mubr.f32.gmra.mrb[0].mxu0 %v344
        %v568 = vpop.f32.mrb[0].mxu0
        %v569 = vadd.f32 %v485, %v568
        %v570 = vpop.f32.mrb[0].mxu0
        %v571 = vadd.f32 %v489, %v570
        %572 = vmatprep.mubr.f32.mxu0 %v347
        %573 = vmatmul.mubr.f32.gmra.mrb[0].mxu0 %v346
        %v574 = vpop.f32.mrb[0].mxu0
        %v575 = vadd.f32 %v485, %v574
        %v576 = vpop.f32.mrb[0].mxu0
        %v577 = vadd.f32 %v489, %v576
        %578 = vmatprep.mubr.f32.mxu0 %v349
        %579 = vmatmul.mubr.f32.gmra.mrb[0].mxu0 %v348
        %v580 = vpop.f32.mrb[0].mxu0
        %v581 = vadd.f32 %v485, %v580
        %v582 = vpop.f32.mrb[0].mxu0
        %v583 = vadd.f32 %v489, %v582
        %584 = vmatprep.mubr.f32.mxu0 %v351
        %585 = vmatmul.mubr.f32.gmra.mrb[0].mxu0 %v350
        %v586 = vpop.f32.mrb[0].mxu0
        %v587 = vadd.f32 %v485, %v586
        %v588 = vpop.f32.mrb[0].mxu0
        %v589 = vadd.f32 %v489, %v588
        %590 = vdwg.mxu0
        %591 = vmatprep.subr.mxu0 %v355
        %592 = vmatpush1.msra.mxu0 %v354
        %593 = vmatprep.subr.mxu0 %v359
        %594 = vmatpush1.msra.mxu0 %v358
        %595 = vmatprep.subr.mxu0 %v363
        %596 = vmatpush1.msra.mxu0 %v362
        %597 = vmatprep.subr.mxu0 %v367
        %598 = vmatpush1.msra.mxu0 %v366
        %599 = vmatprep.subr.mxu0 %v371
        %600 = vmatpush1.msra.mxu0 %v370
        %601 = vmatprep.subr.mxu0 %v375
        %602 = vmatpush1.msra.mxu0 %v374
        %603 = vmatprep.subr.mxu0 %v379
        %604 = vmatpush1.msra.mxu0 %v378
        %605 = vmatprep.subr.mxu0 %v383
        %606 = vmatpush1.msra.mxu0 %v382
        %607 = vmatprep.subr.mxu0 %v387
        %608 = vmatpush1.msra.mxu0 %v386
        %609 = vmatprep.subr.mxu0 %v391
        %610 = vmatpush1.msra.mxu0 %v390
        %611 = vmatprep.subr.mxu0 %v395
        %612 = vmatpush1.msra.mxu0 %v394
        %613 = vmatprep.subr.mxu0 %v399
        %614 = vmatpush1.msra.mxu0 %v398
        %615 = vmatprep.subr.mxu0 %v403
        %616 = vmatpush1.msra.mxu0 %v402
        %617 = vmatprep.subr.mxu0 %v407
        %618 = vmatpush1.msra.mxu0 %v406
        %619 = vmatprep.subr.mxu0 %v411
        %620 = vmatpush1.msra.mxu0 %v410
        %621 = vmatprep.subr.mxu0 %v415
        %622 = vmatpush1.msra.mxu0 %v414
        %623 = vmatprep.subr.mxu0 %v419
        %624 = vmatpush1.msra.mxu0 %v418
        %625 = vmatprep.subr.mxu0 %v423
        %626 = vmatpush1.msra.mxu0 %v422
        %627 = vmatprep.subr.mxu0 %v427
        %628 = vmatpush1.msra.mxu0 %v426
        %629 = vmatprep.subr.mxu0 %v431
        %630 = vmatpush1.msra.mxu0 %v430
        %631 = vmatprep.subr.mxu0 %v435
        %632 = vmatpush1.msra.mxu0 %v434
        %633 = vmatprep.subr.mxu0 %v439
        %634 = vmatpush1.msra.mxu0 %v438
        %635 = vmatprep.subr.mxu0 %v443
        %636 = vmatpush1.msra.mxu0 %v442
        %637 = vmatprep.subr.mxu0 %v447
        %638 = vmatpush1.msra.mxu0 %v446
        %639 = vmatprep.subr.mxu0 %v451
        %640 = vmatpush1.msra.mxu0 %v450
        %641 = vmatprep.subr.mxu0 %v455
        %642 = vmatpush1.msra.mxu0 %v454
        %643 = vmatprep.subr.mxu0 %v459
        %644 = vmatpush1.msra.mxu0 %v458
        %645 = vmatprep.subr.mxu0 %v463
        %646 = vmatpush1.msra.mxu0 %v462
        %647 = vmatprep.subr.mxu0 %v467
        %648 = vmatpush1.msra.mxu0 %v466
        %649 = vmatprep.subr.mxu0 %v471
        %650 = vmatpush1.msra.mxu0 %v470
        %651 = vmatprep.subr.mxu0 %v475
        %652 = vmatpush1.msra.mxu0 %v474
        %653 = vmatprep.subr.mxu0 %v479
        %654 = vmatpush1.msra.mxu0 %v478
        %655 = vmatprep.mubr.f32.mxu0 %v345
        %656 = vmatmul.mubr.f32.gmra.mrb[0].mxu0 %v344
        %v657 = vpop.f32.mrb[0].mxu0
        %v658 = vadd.f32 %v493, %v657
        %v659 = vpop.f32.mrb[0].mxu0
        %v660 = vadd.f32 %v497, %v659
        %661 = vmatprep.mubr.f32.mxu0 %v347
        %662 = vmatmul.mubr.f32.gmra.mrb[0].mxu0 %v346
        %v663 = vpop.f32.mrb[0].mxu0
        %v664 = vadd.f32 %v493, %v663
        %v665 = vpop.f32.mrb[0].mxu0
        %v666 = vadd.f32 %v497, %v665
        %667 = vmatprep.mubr.f32.mxu0 %v349
        %668 = vmatmul.mubr.f32.gmra.mrb[0].mxu0 %v348
        %v669 = vpop.f32.mrb[0].mxu0
        %v670 = vadd.f32 %v493, %v669
        %v671 = vpop.f32.mrb[0].mxu0
        %v672 = vadd.f32 %v497, %v671
        %673 = vmatprep.mubr.f32.mxu0 %v351
        %674 = vmatmul.mubr.f32.gmra.mrb[0].mxu0 %v350
        %v675 = vpop.f32.mrb[0].mxu0
        %v676 = vadd.f32 %v493, %v675
        %v677 = vpop.f32.mrb[0].mxu0
        %v678 = vadd.f32 %v497, %v677
        %679 = vdwg.mxu0
        %v680 = vmax.f32 %v569, 0.0
        %v681 = vmax.f32 %v571, 0.0
        %v682 = vmax.f32 %v658, 0.0
        %v683 = vmax.f32 %v660, 0.0
        %v684 = vmax.f32 %v575, 0.0
        %v685 = vmax.f32 %v577, 0.0
        %v686 = vmax.f32 %v664, 0.0
        %v687 = vmax.f32 %v666, 0.0
        %v688 = vmax.f32 %v581, 0.0
        %v689 = vmax.f32 %v583, 0.0
        %v690 = vmax.f32 %v670, 0.0
        %v691 = vmax.f32 %v672, 0.0
        %v692 = vmax.f32 %v587, 0.0
        %v693 = vmax.f32 %v589, 0.0
        %v694 = vmax.f32 %v676, 0.0
        %v695 = vmax.f32 %v678, 0.0
        %v696 = vld [vmem:[#allocation7] sm:$0xff]
        %v697 = vld [vmem:[#allocation7 + $0x8] sm:$0xff]
        %v698 = vld [vmem:[#allocation7 + $0x10] sm:$0xff]
        %v699 = vld [vmem:[#allocation7 + $0x18] sm:$0xff]
        %v700 = vld [vmem:[#allocation7 + $0x20] sm:$0xff]
        %v701 = vld [vmem:[#allocation7 + $0x28] sm:$0xff]
        %v702 = vld [vmem:[#allocation7 + $0x30] sm:$0xff]
        %v703 = vld [vmem:[#allocation7 + $0x38] sm:$0xff]
        %v704 = vld [vmem:[#allocation7 + $0x40] sm:$0xff]
        %v705 = vld [vmem:[#allocation7 + $0x48] sm:$0xff]
        %v706 = vld [vmem:[#allocation7 + $0x50] sm:$0xff]
        %v707 = vld [vmem:[#allocation7 + $0x58] sm:$0xff]
        %v708 = vld [vmem:[#allocation7 + $0x60] sm:$0xff]
        %v709 = vld [vmem:[#allocation7 + $0x68] sm:$0xff]
        %v710 = vld [vmem:[#allocation7 + $0x70] sm:$0xff]
        %v711 = vld [vmem:[#allocation7 + $0x78] sm:$0xff]
        %v712 = vld [vmem:[#allocation7 + $0x80] sm:$0xff]
        %v713 = vld [vmem:[#allocation7 + $0x88] sm:$0xff]
        %v714 = vld [vmem:[#allocation7 + $0x90] sm:$0xff]
        %v715 = vld [vmem:[#allocation7 + $0x98] sm:$0xff]
        %v716 = vld [vmem:[#allocation7 + $0xa0] sm:$0xff]
        %v717 = vld [vmem:[#allocation7 + $0xa8] sm:$0xff]
        %v718 = vld [vmem:[#allocation7 + $0xb0] sm:$0xff]
        %v719 = vld [vmem:[#allocation7 + $0xb8] sm:$0xff]
        %v720 = vld [vmem:[#allocation7 + $0xc0] sm:$0xff]
        %v721 = vld [vmem:[#allocation7 + $0xc8] sm:$0xff]
        %v722 = vld [vmem:[#allocation7 + $0xd0] sm:$0xff]
        %v723 = vld [vmem:[#allocation7 + $0xd8] sm:$0xff]
        %v724 = vld [vmem:[#allocation7 + $0xe0] sm:$0xff]
        %v725 = vld [vmem:[#allocation7 + $0xe8] sm:$0xff]
        %v726 = vld [vmem:[#allocation7 + $0xf0] sm:$0xff]
        %v727 = vld [vmem:[#allocation7 + $0xf8] sm:$0xff]
        %v728 = vld [vmem:[#allocation7 + $0x100] sm:$0xff]
        %v729 = vld [vmem:[#allocation7 + $0x108] sm:$0xff]
        %v730 = vld [vmem:[#allocation7 + $0x110] sm:$0xff]
        %v731 = vld [vmem:[#allocation7 + $0x118] sm:$0xff]
        %v732 = vld [vmem:[#allocation7 + $0x120] sm:$0xff]
        %v733 = vld [vmem:[#allocation7 + $0x128] sm:$0xff]
        %v734 = vld [vmem:[#allocation7 + $0x130] sm:$0xff]
        %v735 = vld [vmem:[#allocation7 + $0x138] sm:$0xff]
        %v736 = vld [vmem:[#allocation7 + $0x140] sm:$0xff]
        %v737 = vld [vmem:[#allocation7 + $0x148] sm:$0xff]
        %v738 = vld [vmem:[#allocation7 + $0x150] sm:$0xff]
        %v739 = vld [vmem:[#allocation7 + $0x158] sm:$0xff]
        %v740 = vld [vmem:[#allocation7 + $0x160] sm:$0xff]
        %v741 = vld [vmem:[#allocation7 + $0x168] sm:$0xff]
        %v742 = vld [vmem:[#allocation7 + $0x170] sm:$0xff]
        %v743 = vld [vmem:[#allocation7 + $0x178] sm:$0xff]
        %v744 = vld [vmem:[#allocation7 + $0x180] sm:$0xff]
        %v745 = vld [vmem:[#allocation7 + $0x188] sm:$0xff]
        %v746 = vld [vmem:[#allocation7 + $0x190] sm:$0xff]
        %v747 = vld [vmem:[#allocation7 + $0x198] sm:$0xff]
        %v748 = vld [vmem:[#allocation7 + $0x1a0] sm:$0xff]
        %v749 = vld [vmem:[#allocation7 + $0x1a8] sm:$0xff]
        %v750 = vld [vmem:[#allocation7 + $0x1b0] sm:$0xff]
        %v751 = vld [vmem:[#allocation7 + $0x1b8] sm:$0xff]
        %v752 = vld [vmem:[#allocation7 + $0x1c0] sm:$0xff]
        %v753 = vld [vmem:[#allocation7 + $0x1c8] sm:$0xff]
        %v754 = vld [vmem:[#allocation7 + $0x1d0] sm:$0xff]
        %v755 = vld [vmem:[#allocation7 + $0x1d8] sm:$0xff]
        %v756 = vld [vmem:[#allocation7 + $0x1e0] sm:$0xff]
        %v757 = vld [vmem:[#allocation7 + $0x1e8] sm:$0xff]
        %v758 = vld [vmem:[#allocation7 + $0x1f0] sm:$0xff]
        %v759 = vld [vmem:[#allocation7 + $0x1f8] sm:$0xff]
        %v760 = vld [vmem:[#allocation7 + $0x200] sm:$0xff]
        %v761 = vld [vmem:[#allocation7 + $0x208] sm:$0xff]
        %v762 = vld [vmem:[#allocation7 + $0x210] sm:$0xff]
        %v763 = vld [vmem:[#allocation7 + $0x218] sm:$0xff]
        %v764 = vld [vmem:[#allocation7 + $0x220] sm:$0xff]
        %v765 = vld [vmem:[#allocation7 + $0x228] sm:$0xff]
        %v766 = vld [vmem:[#allocation7 + $0x230] sm:$0xff]
        %v767 = vld [vmem:[#allocation7 + $0x238] sm:$0xff]
        %v768 = vld [vmem:[#allocation7 + $0x240] sm:$0xff]
        %v769 = vld [vmem:[#allocation7 + $0x248] sm:$0xff]
        %v770 = vld [vmem:[#allocation7 + $0x250] sm:$0xff]
        %v771 = vld [vmem:[#allocation7 + $0x258] sm:$0xff]
        %v772 = vld [vmem:[#allocation7 + $0x260] sm:$0xff]
        %v773 = vld [vmem:[#allocation7 + $0x268] sm:$0xff]
        %v774 = vld [vmem:[#allocation7 + $0x270] sm:$0xff]
        %v775 = vld [vmem:[#allocation7 + $0x278] sm:$0xff]
        %v776 = vld [vmem:[#allocation7 + $0x280] sm:$0xff]
        %v777 = vld [vmem:[#allocation7 + $0x288] sm:$0xff]
        %v778 = vld [vmem:[#allocation7 + $0x290] sm:$0xff]
        %v779 = vld [vmem:[#allocation7 + $0x298] sm:$0xff]
        %v780 = vld [vmem:[#allocation7 + $0x2a0] sm:$0xff]
        %v781 = vld [vmem:[#allocation7 + $0x2a8] sm:$0xff]
        %v782 = vld [vmem:[#allocation7 + $0x2b0] sm:$0xff]
        %v783 = vld [vmem:[#allocation7 + $0x2b8] sm:$0xff]
        %v784 = vld [vmem:[#allocation7 + $0x2c0] sm:$0xff]
        %v785 = vld [vmem:[#allocation7 + $0x2c8] sm:$0xff]
        %v786 = vld [vmem:[#allocation7 + $0x2d0] sm:$0xff]
        %v787 = vld [vmem:[#allocation7 + $0x2d8] sm:$0xff]
        %v788 = vld [vmem:[#allocation7 + $0x2e0] sm:$0xff]
        %v789 = vld [vmem:[#allocation7 + $0x2e8] sm:$0xff]
        %v790 = vld [vmem:[#allocation7 + $0x2f0] sm:$0xff]
        %v791 = vld [vmem:[#allocation7 + $0x2f8] sm:$0xff]
        %v792 = vld [vmem:[#allocation7 + $0x300] sm:$0xff]
        %v793 = vld [vmem:[#allocation7 + $0x308] sm:$0xff]
        %v794 = vld [vmem:[#allocation7 + $0x310] sm:$0xff]
        %v795 = vld [vmem:[#allocation7 + $0x318] sm:$0xff]
        %v796 = vld [vmem:[#allocation7 + $0x320] sm:$0xff]
        %v797 = vld [vmem:[#allocation7 + $0x328] sm:$0xff]
        %v798 = vld [vmem:[#allocation7 + $0x330] sm:$0xff]
        %v799 = vld [vmem:[#allocation7 + $0x338] sm:$0xff]
        %v800 = vld [vmem:[#allocation7 + $0x340] sm:$0xff]
        %v801 = vld [vmem:[#allocation7 + $0x348] sm:$0xff]
        %v802 = vld [vmem:[#allocation7 + $0x350] sm:$0xff]
        %v803 = vld [vmem:[#allocation7 + $0x358] sm:$0xff]
        %v804 = vld [vmem:[#allocation7 + $0x360] sm:$0xff]
        %v805 = vld [vmem:[#allocation7 + $0x368] sm:$0xff]
        %v806 = vld [vmem:[#allocation7 + $0x370] sm:$0xff]
        %v807 = vld [vmem:[#allocation7 + $0x378] sm:$0xff]
        %v808 = vld [vmem:[#allocation7 + $0x380] sm:$0xff]
        %v809 = vld [vmem:[#allocation7 + $0x388] sm:$0xff]
        %v810 = vld [vmem:[#allocation7 + $0x390] sm:$0xff]
        %v811 = vld [vmem:[#allocation7 + $0x398] sm:$0xff]
        %v812 = vld [vmem:[#allocation7 + $0x3a0] sm:$0xff]
        %v813 = vld [vmem:[#allocation7 + $0x3a8] sm:$0xff]
        %v814 = vld [vmem:[#allocation7 + $0x3b0] sm:$0xff]
        %v815 = vld [vmem:[#allocation7 + $0x3b8] sm:$0xff]
        %v816 = vld [vmem:[#allocation7 + $0x3c0] sm:$0xff]
        %v817 = vld [vmem:[#allocation7 + $0x3c8] sm:$0xff]
        %v818 = vld [vmem:[#allocation7 + $0x3d0] sm:$0xff]
        %v819 = vld [vmem:[#allocation7 + $0x3d8] sm:$0xff]
        %v820 = vld [vmem:[#allocation7 + $0x3e0] sm:$0xff]
        %v821 = vld [vmem:[#allocation7 + $0x3e8] sm:$0xff]
        %v822 = vld [vmem:[#allocation7 + $0x3f0] sm:$0xff]
        %v823 = vld [vmem:[#allocation7 + $0x3f8] sm:$0xff]
        %v824 = vld [vmem:[#allocation7 + $0x400] sm:$0xff]
        %v825 = vld [vmem:[#allocation7 + $0x408] sm:$0xff]
        %v826 = vld [vmem:[#allocation7 + $0x410] sm:$0xff]
        %v827 = vld [vmem:[#allocation7 + $0x418] sm:$0xff]
        %v828 = vld [vmem:[#allocation7 + $0x420] sm:$0xff]
        %v829 = vld [vmem:[#allocation7 + $0x428] sm:$0xff]
        %v830 = vld [vmem:[#allocation7 + $0x430] sm:$0xff]
        %v831 = vld [vmem:[#allocation7 + $0x438] sm:$0xff]
        %v832 = vld [vmem:[#allocation7 + $0x440] sm:$0xff]
        %v833 = vld [vmem:[#allocation7 + $0x448] sm:$0xff]
        %v834 = vld [vmem:[#allocation7 + $0x450] sm:$0xff]
        %v835 = vld [vmem:[#allocation7 + $0x458] sm:$0xff]
        %v836 = vld [vmem:[#allocation7 + $0x460] sm:$0xff]
        %v837 = vld [vmem:[#allocation7 + $0x468] sm:$0xff]
        %v838 = vld [vmem:[#allocation7 + $0x470] sm:$0xff]
        %v839 = vld [vmem:[#allocation7 + $0x478] sm:$0xff]
        %v840 = vld [vmem:[#allocation7 + $0x480] sm:$0xff]
        %v841 = vld [vmem:[#allocation7 + $0x488] sm:$0xff]
        %v842 = vld [vmem:[#allocation7 + $0x490] sm:$0xff]
        %v843 = vld [vmem:[#allocation7 + $0x498] sm:$0xff]
        %v844 = vld [vmem:[#allocation7 + $0x4a0] sm:$0xff]
        %v845 = vld [vmem:[#allocation7 + $0x4a8] sm:$0xff]
        %v846 = vld [vmem:[#allocation7 + $0x4b0] sm:$0xff]
        %v847 = vld [vmem:[#allocation7 + $0x4b8] sm:$0xff]
        %v848 = vld [vmem:[#allocation7 + $0x4c0] sm:$0xff]
        %v849 = vld [vmem:[#allocation7 + $0x4c8] sm:$0xff]
        %v850 = vld [vmem:[#allocation7 + $0x4d0] sm:$0xff]
        %v851 = vld [vmem:[#allocation7 + $0x4d8] sm:$0xff]
        %v852 = vld [vmem:[#allocation7 + $0x4e0] sm:$0xff]
        %v853 = vld [vmem:[#allocation7 + $0x4e8] sm:$0xff]
        %v854 = vld [vmem:[#allocation7 + $0x4f0] sm:$0xff]
        %v855 = vld [vmem:[#allocation7 + $0x4f8] sm:$0xff]
        %v856 = vld [vmem:[#allocation7 + $0x500] sm:$0xff]
        %v857 = vld [vmem:[#allocation7 + $0x508] sm:$0xff]
        %v858 = vld [vmem:[#allocation7 + $0x510] sm:$0xff]
        %v859 = vld [vmem:[#allocation7 + $0x518] sm:$0xff]
        %v860 = vld [vmem:[#allocation7 + $0x520] sm:$0xff]
        %v861 = vld [vmem:[#allocation7 + $0x528] sm:$0xff]
        %v862 = vld [vmem:[#allocation7 + $0x530] sm:$0xff]
        %v863 = vld [vmem:[#allocation7 + $0x538] sm:$0xff]
        %v864 = vld [vmem:[#allocation7 + $0x540] sm:$0xff]
        %v865 = vld [vmem:[#allocation7 + $0x548] sm:$0xff]
        %v866 = vld [vmem:[#allocation7 + $0x550] sm:$0xff]
        %v867 = vld [vmem:[#allocation7 + $0x558] sm:$0xff]
        %v868 = vld [vmem:[#allocation7 + $0x560] sm:$0xff]
        %v869 = vld [vmem:[#allocation7 + $0x568] sm:$0xff]
        %v870 = vld [vmem:[#allocation7 + $0x570] sm:$0xff]
        %v871 = vld [vmem:[#allocation7 + $0x578] sm:$0xff]
        %v872 = vld [vmem:[#allocation7 + $0x580] sm:$0xff]
        %v873 = vld [vmem:[#allocation7 + $0x588] sm:$0xff]
        %v874 = vld [vmem:[#allocation7 + $0x590] sm:$0xff]
        %v875 = vld [vmem:[#allocation7 + $0x598] sm:$0xff]
        %v876 = vld [vmem:[#allocation7 + $0x5a0] sm:$0xff]
        %v877 = vld [vmem:[#allocation7 + $0x5a8] sm:$0xff]
        %v878 = vld [vmem:[#allocation7 + $0x5b0] sm:$0xff]
        %v879 = vld [vmem:[#allocation7 + $0x5b8] sm:$0xff]
        %v880 = vld [vmem:[#allocation7 + $0x5c0] sm:$0xff]
        %v881 = vld [vmem:[#allocation7 + $0x5c8] sm:$0xff]
        %v882 = vld [vmem:[#allocation7 + $0x5d0] sm:$0xff]
        %v883 = vld [vmem:[#allocation7 + $0x5d8] sm:$0xff]
        %v884 = vld [vmem:[#allocation7 + $0x5e0] sm:$0xff]
        %v885 = vld [vmem:[#allocation7 + $0x5e8] sm:$0xff]
        %v886 = vld [vmem:[#allocation7 + $0x5f0] sm:$0xff]
        %v887 = vld [vmem:[#allocation7 + $0x5f8] sm:$0xff]
        %v888 = vld [vmem:[%s4] sm:$0x7]
        %v890 = vlaneseq
        %v891 = vshrl.u32 %v890, 7
        %v892 = vsub.s32 0, %v891
        %v893 = vrot.slane %v888, %v892
        %v894 = vlaneseq
        %v895 = vshrl.u32 %v894, 7
        %v896 = vsub.s32 1, %v895
        %v897 = vrot.slane %v888, %v896
        %v898 = vlaneseq
        %v899 = vshrl.u32 %v898, 7
        %v900 = vsub.s32 2, %v899
        %v901 = vrot.slane %v888, %v900
        %905 = vmatprep.subr.mxu0 %v697
        %906 = vmatpush1.msra.mxu0 %v696
        %907 = vmatprep.subr.mxu0 %v700
        %908 = vmatpush1.msra.mxu0 %v699
        %909 = vmatprep.subr.mxu0 %v703
        %910 = vmatpush1.msra.mxu0 %v702
        %911 = vmatprep.subr.mxu0 %v706
        %912 = vmatpush1.msra.mxu0 %v705
        %913 = vmatprep.subr.mxu0 %v709
        %914 = vmatpush1.msra.mxu0 %v708
        %915 = vmatprep.subr.mxu0 %v712
        %916 = vmatpush1.msra.mxu0 %v711
        %917 = vmatprep.subr.mxu0 %v715
        %918 = vmatpush1.msra.mxu0 %v714
        %919 = vmatprep.subr.mxu0 %v718
        %920 = vmatpush1.msra.mxu0 %v717
        %921 = vmatprep.subr.mxu0 %v721
        %922 = vmatpush1.msra.mxu0 %v720
        %923 = vmatprep.subr.mxu0 %v724
        %924 = vmatpush1.msra.mxu0 %v723
        %925 = vmatprep.subr.mxu0 %v727
        %926 = vmatpush1.msra.mxu0 %v726
        %927 = vmatprep.subr.mxu0 %v730
        %928 = vmatpush1.msra.mxu0 %v729
        %929 = vmatprep.subr.mxu0 %v733
        %930 = vmatpush1.msra.mxu0 %v732
        %931 = vmatprep.subr.mxu0 %v736
        %932 = vmatpush1.msra.mxu0 %v735
        %933 = vmatprep.subr.mxu0 %v739
        %934 = vmatpush1.msra.mxu0 %v738
        %935 = vmatprep.subr.mxu0 %v742
        %936 = vmatpush1.msra.mxu0 %v741
        %937 = vmatprep.subr.mxu0 %v745
        %938 = vmatpush1.msra.mxu0 %v744
        %939 = vmatprep.subr.mxu0 %v748
        %940 = vmatpush1.msra.mxu0 %v747
        %941 = vmatprep.subr.mxu0 %v751
        %942 = vmatpush1.msra.mxu0 %v750
        %943 = vmatprep.subr.mxu0 %v754
        %944 = vmatpush1.msra.mxu0 %v753
        %945 = vmatprep.subr.mxu0 %v757
        %946 = vmatpush1.msra.mxu0 %v756
        %947 = vmatprep.subr.mxu0 %v760
        %948 = vmatpush1.msra.mxu0 %v759
        %949 = vmatprep.subr.mxu0 %v763
        %950 = vmatpush1.msra.mxu0 %v762
        %951 = vmatprep.subr.mxu0 %v766
        %952 = vmatpush1.msra.mxu0 %v765
        %953 = vmatprep.subr.mxu0 %v769
        %954 = vmatpush1.msra.mxu0 %v768
        %955 = vmatprep.subr.mxu0 %v772
        %956 = vmatpush1.msra.mxu0 %v771
        %957 = vmatprep.subr.mxu0 %v775
        %958 = vmatpush1.msra.mxu0 %v774
        %959 = vmatprep.subr.mxu0 %v778
        %960 = vmatpush1.msra.mxu0 %v777
        %961 = vmatprep.subr.mxu0 %v781
        %962 = vmatpush1.msra.mxu0 %v780
        %963 = vmatprep.subr.mxu0 %v784
        %964 = vmatpush1.msra.mxu0 %v783
        %965 = vmatprep.subr.mxu0 %v787
        %966 = vmatpush1.msra.mxu0 %v786
        %967 = vmatprep.subr.mxu0 %v790
        %968 = vmatpush1.msra.mxu0 %v789
        %969 = vmatprep.mubr.f32.mxu0 %v681
        %970 = vmatmul.mubr.f32.gmra.mrb[0].mxu0 %v680
        %v971 = vpop.f32.mrb[0].mxu0
        %v972 = vadd.f32 %v893, %v971
        %v973 = vpop.f32.mrb[0].mxu0
        %v974 = vadd.f32 %v897, %v973
        %975 = vmatprep.mubr.f32.mxu0 %v685
        %976 = vmatmul.mubr.f32.gmra.mrb[0].mxu0 %v684
        %v977 = vpop.f32.mrb[0].mxu0
        %v978 = vadd.f32 %v893, %v977
        %v979 = vpop.f32.mrb[0].mxu0
        %v980 = vadd.f32 %v897, %v979
        %981 = vmatprep.mubr.f32.mxu0 %v689
        %982 = vmatmul.mubr.f32.gmra.mrb[0].mxu0 %v688
        %v983 = vpop.f32.mrb[0].mxu0
        %v984 = vadd.f32 %v893, %v983
        %v985 = vpop.f32.mrb[0].mxu0
        %v986 = vadd.f32 %v897, %v985
        %987 = vmatprep.mubr.f32.mxu0 %v693
        %988 = vmatmul.mubr.f32.gmra.mrb[0].mxu0 %v692
        %v989 = vpop.f32.mrb[0].mxu0
        %v990 = vadd.f32 %v893, %v989
        %v991 = vpop.f32.mrb[0].mxu0
        %v992 = vadd.f32 %v897, %v991
        %993 = vdwg.mxu0
        %994 = vmatprep.subr.mxu0 %v793
        %995 = vmatpush1.msra.mxu0 %v792
        %996 = vmatprep.subr.mxu0 %v796
        %997 = vmatpush1.msra.mxu0 %v795
        %998 = vmatprep.subr.mxu0 %v799
        %999 = vmatpush1.msra.mxu0 %v798
        %1000 = vmatprep.subr.mxu0 %v802
        %1001 = vmatpush1.msra.mxu0 %v801
        %1002 = vmatprep.subr.mxu0 %v805
        %1003 = vmatpush1.msra.mxu0 %v804
        %1004 = vmatprep.subr.mxu0 %v808
        %1005 = vmatpush1.msra.mxu0 %v807
        %1006 = vmatprep.subr.mxu0 %v811
        %1007 = vmatpush1.msra.mxu0 %v810
        %1008 = vmatprep.subr.mxu0 %v814
        %1009 = vmatpush1.msra.mxu0 %v813
        %1010 = vmatprep.subr.mxu0 %v817
        %1011 = vmatpush1.msra.mxu0 %v816
        %1012 = vmatprep.subr.mxu0 %v820
        %1013 = vmatpush1.msra.mxu0 %v819
        %1014 = vmatprep.subr.mxu0 %v823
        %1015 = vmatpush1.msra.mxu0 %v822
        %1016 = vmatprep.subr.mxu0 %v826
        %1017 = vmatpush1.msra.mxu0 %v825
        %1018 = vmatprep.subr.mxu0 %v829
        %1019 = vmatpush1.msra.mxu0 %v828
        %1020 = vmatprep.subr.mxu0 %v832
        %1021 = vmatpush1.msra.mxu0 %v831
        %1022 = vmatprep.subr.mxu0 %v835
        %1023 = vmatpush1.msra.mxu0 %v834
        %1024 = vmatprep.subr.mxu0 %v838
        %1025 = vmatpush1.msra.mxu0 %v837
        %1026 = vmatprep.subr.mxu0 %v841
        %1027 = vmatpush1.msra.mxu0 %v840
        %1028 = vmatprep.subr.mxu0 %v844
        %1029 = vmatpush1.msra.mxu0 %v843
        %1030 = vmatprep.subr.mxu0 %v847
        %1031 = vmatpush1.msra.mxu0 %v846
        %1032 = vmatprep.subr.mxu0 %v850
        %1033 = vmatpush1.msra.mxu0 %v849
        %1034 = vmatprep.subr.mxu0 %v853
        %1035 = vmatpush1.msra.mxu0 %v852
        %1036 = vmatprep.subr.mxu0 %v856
        %1037 = vmatpush1.msra.mxu0 %v855
        %1038 = vmatprep.subr.mxu0 %v859
        %1039 = vmatpush1.msra.mxu0 %v858
        %1040 = vmatprep.subr.mxu0 %v862
        %1041 = vmatpush1.msra.mxu0 %v861
        %1042 = vmatprep.subr.mxu0 %v865
        %1043 = vmatpush1.msra.mxu0 %v864
        %1044 = vmatprep.subr.mxu0 %v868
        %1045 = vmatpush1.msra.mxu0 %v867
        %1046 = vmatprep.subr.mxu0 %v871
        %1047 = vmatpush1.msra.mxu0 %v870
        %1048 = vmatprep.subr.mxu0 %v874
        %1049 = vmatpush1.msra.mxu0 %v873
        %1050 = vmatprep.subr.mxu0 %v877
        %1051 = vmatpush1.msra.mxu0 %v876
        %1052 = vmatprep.subr.mxu0 %v880
        %1053 = vmatpush1.msra.mxu0 %v879
        %1054 = vmatprep.subr.mxu0 %v883
        %1055 = vmatpush1.msra.mxu0 %v882
        %1056 = vmatprep.subr.mxu0 %v886
        %1057 = vmatpush1.msra.mxu0 %v885
        %1058 = vmatprep.mubr.f32.mxu0 %v683
        %1059 = vmatmul.mubr.f32.gmra.mrb[0].mxu0 %v682
        %v1060 = vpop.f32.mrb[0].mxu0
        %v1061 = vadd.f32 %v972, %v1060
        %v1062 = vpop.f32.mrb[0].mxu0
        %v1063 = vadd.f32 %v974, %v1062
        %1064 = vmatprep.mubr.f32.mxu0 %v687
        %1065 = vmatmul.mubr.f32.gmra.mrb[0].mxu0 %v686
        %v1066 = vpop.f32.mrb[0].mxu0
        %v1067 = vadd.f32 %v978, %v1066
        %v1068 = vpop.f32.mrb[0].mxu0
        %v1069 = vadd.f32 %v980, %v1068
        %1070 = vmatprep.mubr.f32.mxu0 %v691
        %1071 = vmatmul.mubr.f32.gmra.mrb[0].mxu0 %v690
        %v1072 = vpop.f32.mrb[0].mxu0
        %v1073 = vadd.f32 %v984, %v1072
        %v1074 = vpop.f32.mrb[0].mxu0
        %v1075 = vadd.f32 %v986, %v1074
        %1076 = vmatprep.mubr.f32.mxu0 %v695
        %1077 = vmatmul.mubr.f32.gmra.mrb[0].mxu0 %v694
        %v1078 = vpop.f32.mrb[0].mxu0
        %v1079 = vadd.f32 %v990, %v1078
        %v1080 = vpop.f32.mrb[0].mxu0
        %v1081 = vadd.f32 %v992, %v1080
        %1082 = vdwg.mxu0
        %1083 = vmatprep.subr.mxu0 0.0
        %1084 = vmatpush1.msra.mxu0 %v698
        %1085 = vmatprep.subr.mxu0 0.0
        %1086 = vmatpush1.msra.mxu0 %v701
        %1087 = vmatprep.subr.mxu0 0.0
        %1088 = vmatpush1.msra.mxu0 %v704
        %1089 = vmatprep.subr.mxu0 0.0
        %1090 = vmatpush1.msra.mxu0 %v707
        %1091 = vmatprep.subr.mxu0 0.0
        %1092 = vmatpush1.msra.mxu0 %v710
        %1093 = vmatprep.subr.mxu0 0.0
        %1094 = vmatpush1.msra.mxu0 %v713
        %1095 = vmatprep.subr.mxu0 0.0
        %1096 = vmatpush1.msra.mxu0 %v716
        %1097 = vmatprep.subr.mxu0 0.0
        %1098 = vmatpush1.msra.mxu0 %v719
        %1099 = vmatprep.subr.mxu0 0.0
        %1100 = vmatpush1.msra.mxu0 %v722
        %1101 = vmatprep.subr.mxu0 0.0
        %1102 = vmatpush1.msra.mxu0 %v725
        %1103 = vmatprep.subr.mxu0 0.0
        %1104 = vmatpush1.msra.mxu0 %v728
        %1105 = vmatprep.subr.mxu0 0.0
        %1106 = vmatpush1.msra.mxu0 %v731
        %1107 = vmatprep.subr.mxu0 0.0
        %1108 = vmatpush1.msra.mxu0 %v734
        %1109 = vmatprep.subr.mxu0 0.0
        %1110 = vmatpush1.msra.mxu0 %v737
        %1111 = vmatprep.subr.mxu0 0.0
        %1112 = vmatpush1.msra.mxu0 %v740
        %1113 = vmatprep.subr.mxu0 0.0
        %1114 = vmatpush1.msra.mxu0 %v743
        %1115 = vmatprep.subr.mxu0 0.0
        %1116 = vmatpush1.msra.mxu0 %v746
        %1117 = vmatprep.subr.mxu0 0.0
        %1118 = vmatpush1.msra.mxu0 %v749
        %1119 = vmatprep.subr.mxu0 0.0
        %1120 = vmatpush1.msra.mxu0 %v752
        %1121 = vmatprep.subr.mxu0 0.0
        %1122 = vmatpush1.msra.mxu0 %v755
        %1123 = vmatprep.subr.mxu0 0.0
        %1124 = vmatpush1.msra.mxu0 %v758
        %1125 = vmatprep.subr.mxu0 0.0
        %1126 = vmatpush1.msra.mxu0 %v761
        %1127 = vmatprep.subr.mxu0 0.0
        %1128 = vmatpush1.msra.mxu0 %v764
        %1129 = vmatprep.subr.mxu0 0.0
        %1130 = vmatpush1.msra.mxu0 %v767
        %1131 = vmatprep.subr.mxu0 0.0
        %1132 = vmatpush1.msra.mxu0 %v770
        %1133 = vmatprep.subr.mxu0 0.0
        %1134 = vmatpush1.msra.mxu0 %v773
        %1135 = vmatprep.subr.mxu0 0.0
        %1136 = vmatpush1.msra.mxu0 %v776
        %1137 = vmatprep.subr.mxu0 0.0
        %1138 = vmatpush1.msra.mxu0 %v779
        %1139 = vmatprep.subr.mxu0 0.0
        %1140 = vmatpush1.msra.mxu0 %v782
        %1141 = vmatprep.subr.mxu0 0.0
        %1142 = vmatpush1.msra.mxu0 %v785
        %1143 = vmatprep.subr.mxu0 0.0
        %1144 = vmatpush1.msra.mxu0 %v788
        %1145 = vmatprep.subr.mxu0 0.0
        %1146 = vmatpush1.msra.mxu0 %v791
        %1147 = vmatprep.mubr.f32.mxu0 %v681
        %1148 = vmatmul.mubr.f32.gmra.mrb[0].mxu0 %v680
        %v1149 = vpop.f32.mrb[0].mxu0
        %v1150 = vadd.f32 %v901, %v1149
        %v1151 = vpop.f32.mrb[0].mxu0
        %1152 = vmatprep.mubr.f32.mxu0 %v685
        %1153 = vmatmul.mubr.f32.gmra.mrb[0].mxu0 %v684
        %v1154 = vpop.f32.mrb[0].mxu0
        %v1155 = vadd.f32 %v901, %v1154
        %v1156 = vpop.f32.mrb[0].mxu0
        %1157 = vmatprep.mubr.f32.mxu0 %v689
        %1158 = vmatmul.mubr.f32.gmra.mrb[0].mxu0 %v688
        %v1159 = vpop.f32.mrb[0].mxu0
        %v1160 = vadd.f32 %v901, %v1159
        %v1161 = vpop.f32.mrb[0].mxu0
        %1162 = vmatprep.mubr.f32.mxu0 %v693
        %1163 = vmatmul.mubr.f32.gmra.mrb[0].mxu0 %v692
        %v1164 = vpop.f32.mrb[0].mxu0
        %v1165 = vadd.f32 %v901, %v1164
        %v1166 = vpop.f32.mrb[0].mxu0
        %1167 = vdwg.mxu0
        %1168 = vmatprep.subr.mxu0 0.0
        %1169 = vmatpush1.msra.mxu0 %v794
        %1170 = vmatprep.subr.mxu0 0.0
        %1171 = vmatpush1.msra.mxu0 %v797
        %1172 = vmatprep.subr.mxu0 0.0
        %1173 = vmatpush1.msra.mxu0 %v800
        %1174 = vmatprep.subr.mxu0 0.0
        %1175 = vmatpush1.msra.mxu0 %v803
        %1176 = vmatprep.subr.mxu0 0.0
        %1177 = vmatpush1.msra.mxu0 %v806
        %1178 = vmatprep.subr.mxu0 0.0
        %1179 = vmatpush1.msra.mxu0 %v809
        %1180 = vmatprep.subr.mxu0 0.0
        %1181 = vmatpush1.msra.mxu0 %v812
        %1182 = vmatprep.subr.mxu0 0.0
        %1183 = vmatpush1.msra.mxu0 %v815
        %1184 = vmatprep.subr.mxu0 0.0
        %1185 = vmatpush1.msra.mxu0 %v818
        %1186 = vmatprep.subr.mxu0 0.0
        %1187 = vmatpush1.msra.mxu0 %v821
        %1188 = vmatprep.subr.mxu0 0.0
        %1189 = vmatpush1.msra.mxu0 %v824
        %1190 = vmatprep.subr.mxu0 0.0
        %1191 = vmatpush1.msra.mxu0 %v827
        %1192 = vmatprep.subr.mxu0 0.0
        %1193 = vmatpush1.msra.mxu0 %v830
        %1194 = vmatprep.subr.mxu0 0.0
        %1195 = vmatpush1.msra.mxu0 %v833
        %1196 = vmatprep.subr.mxu0 0.0
        %1197 = vmatpush1.msra.mxu0 %v836
        %1198 = vmatprep.subr.mxu0 0.0
        %1199 = vmatpush1.msra.mxu0 %v839
        %1200 = vmatprep.subr.mxu0 0.0
        %1201 = vmatpush1.msra.mxu0 %v842
        %1202 = vmatprep.subr.mxu0 0.0
        %1203 = vmatpush1.msra.mxu0 %v845
        %1204 = vmatprep.subr.mxu0 0.0
        %1205 = vmatpush1.msra.mxu0 %v848
        %1206 = vmatprep.subr.mxu0 0.0
        %1207 = vmatpush1.msra.mxu0 %v851
        %1208 = vmatprep.subr.mxu0 0.0
        %1209 = vmatpush1.msra.mxu0 %v854
        %1210 = vmatprep.subr.mxu0 0.0
        %1211 = vmatpush1.msra.mxu0 %v857
        %1212 = vmatprep.subr.mxu0 0.0
        %1213 = vmatpush1.msra.mxu0 %v860
        %1214 = vmatprep.subr.mxu0 0.0
        %1215 = vmatpush1.msra.mxu0 %v863
        %1216 = vmatprep.subr.mxu0 0.0
        %1217 = vmatpush1.msra.mxu0 %v866
        %1218 = vmatprep.subr.mxu0 0.0
        %1219 = vmatpush1.msra.mxu0 %v869
        %1220 = vmatprep.subr.mxu0 0.0
        %1221 = vmatpush1.msra.mxu0 %v872
        %1222 = vmatprep.subr.mxu0 0.0
        %1223 = vmatpush1.msra.mxu0 %v875
        %1224 = vmatprep.subr.mxu0 0.0
        %1225 = vmatpush1.msra.mxu0 %v878
        %1226 = vmatprep.subr.mxu0 0.0
        %1227 = vmatpush1.msra.mxu0 %v881
        %1228 = vmatprep.subr.mxu0 0.0
        %1229 = vmatpush1.msra.mxu0 %v884
        %1230 = vmatprep.subr.mxu0 0.0
        %1231 = vmatpush1.msra.mxu0 %v887
        %1232 = vmatprep.mubr.f32.mxu0 %v683
        %1233 = vmatmul.mubr.f32.gmra.mrb[0].mxu0 %v682
        %v1234 = vpop.f32.mrb[0].mxu0
        %v1235 = vadd.f32 %v1150, %v1234
        %v1236 = vpop.f32.mrb[0].mxu0
        %1237 = vmatprep.mubr.f32.mxu0 %v687
        %1238 = vmatmul.mubr.f32.gmra.mrb[0].mxu0 %v686
        %v1239 = vpop.f32.mrb[0].mxu0
        %v1240 = vadd.f32 %v1155, %v1239
        %v1241 = vpop.f32.mrb[0].mxu0
        %1242 = vmatprep.mubr.f32.mxu0 %v691
        %1243 = vmatmul.mubr.f32.gmra.mrb[0].mxu0 %v690
        %v1244 = vpop.f32.mrb[0].mxu0
        %v1245 = vadd.f32 %v1160, %v1244
        %v1246 = vpop.f32.mrb[0].mxu0
        %1247 = vmatprep.mubr.f32.mxu0 %v695
        %1248 = vmatmul.mubr.f32.gmra.mrb[0].mxu0 %v694
        %v1249 = vpop.f32.mrb[0].mxu0
        %v1250 = vadd.f32 %v1165, %v1249
        %v1251 = vpop.f32.mrb[0].mxu0
        %1252 = vdwg.mxu0
        %v1253 = vmax.f32 %v1061, 0.0
        %v1254 = vmax.f32 %v1063, 0.0
        %v1255 = vmax.f32 %v1235, 0.0
        %v1256 = vmax.f32 %v1067, 0.0
        %v1257 = vmax.f32 %v1069, 0.0
        %v1258 = vmax.f32 %v1240, 0.0
        %v1259 = vmax.f32 %v1073, 0.0
        %v1260 = vmax.f32 %v1075, 0.0
        %v1261 = vmax.f32 %v1245, 0.0
        %v1262 = vmax.f32 %v1079, 0.0
        %v1263 = vmax.f32 %v1081, 0.0
        %v1264 = vmax.f32 %v1250, 0.0
        %v1265 = vld [vmem:[#allocation8] sm:$0xff]
        %v1266 = vld [vmem:[#allocation8 + $0x8] sm:$0xff]
        %v1267 = vld [vmem:[#allocation8 + $0x10] sm:$0xff]
        %v1268 = vld [vmem:[#allocation8 + $0x18] sm:$0xff]
        %v1269 = vld [vmem:[#allocation8 + $0x20] sm:$0xff]
        %v1270 = vld [vmem:[#allocation8 + $0x28] sm:$0xff]
        %v1271 = vld [vmem:[#allocation8 + $0x30] sm:$0xff]
        %v1272 = vld [vmem:[#allocation8 + $0x38] sm:$0xff]
        %v1273 = vld [vmem:[#allocation8 + $0x40] sm:$0xff]
        %v1274 = vld [vmem:[#allocation8 + $0x48] sm:$0xff]
        %v1275 = vld [vmem:[#allocation8 + $0x50] sm:$0xff]
        %v1276 = vld [vmem:[#allocation8 + $0x58] sm:$0xff]
        %v1277 = vld [vmem:[#allocation8 + $0x60] sm:$0xff]
        %v1278 = vld [vmem:[#allocation8 + $0x68] sm:$0xff]
        %v1279 = vld [vmem:[#allocation8 + $0x70] sm:$0xff]
        %v1280 = vld [vmem:[#allocation8 + $0x78] sm:$0xff]
        %v1281 = vld [vmem:[#allocation8 + $0x80] sm:$0xff]
        %v1282 = vld [vmem:[#allocation8 + $0x88] sm:$0xff]
        %v1283 = vld [vmem:[#allocation8 + $0x90] sm:$0xff]
        %v1284 = vld [vmem:[#allocation8 + $0x98] sm:$0xff]
        %v1285 = vld [vmem:[#allocation8 + $0xa0] sm:$0xff]
        %v1286 = vld [vmem:[#allocation8 + $0xa8] sm:$0xff]
        %v1287 = vld [vmem:[#allocation8 + $0xb0] sm:$0xff]
        %v1288 = vld [vmem:[#allocation8 + $0xb8] sm:$0xff]
        %v1289 = vld [vmem:[#allocation8 + $0xc0] sm:$0xff]
        %v1290 = vld [vmem:[#allocation8 + $0xc8] sm:$0xff]
        %v1291 = vld [vmem:[#allocation8 + $0xd0] sm:$0xff]
        %v1292 = vld [vmem:[#allocation8 + $0xd8] sm:$0xff]
        %v1293 = vld [vmem:[#allocation8 + $0xe0] sm:$0xff]
        %v1294 = vld [vmem:[#allocation8 + $0xe8] sm:$0xff]
        %v1295 = vld [vmem:[#allocation8 + $0xf0] sm:$0xff]
        %v1296 = vld [vmem:[#allocation8 + $0xf8] sm:$0xff]
        %v1297 = vld [vmem:[#allocation8 + $0x100] sm:$0xff]
        %v1298 = vld [vmem:[#allocation8 + $0x108] sm:$0xff]
        %v1299 = vld [vmem:[#allocation8 + $0x110] sm:$0xff]
        %v1300 = vld [vmem:[#allocation8 + $0x118] sm:$0xff]
        %v1301 = vld [vmem:[#allocation8 + $0x120] sm:$0xff]
        %v1302 = vld [vmem:[#allocation8 + $0x128] sm:$0xff]
        %v1303 = vld [vmem:[#allocation8 + $0x130] sm:$0xff]
        %v1304 = vld [vmem:[#allocation8 + $0x138] sm:$0xff]
        %v1305 = vld [vmem:[#allocation8 + $0x140] sm:$0xff]
        %v1306 = vld [vmem:[#allocation8 + $0x148] sm:$0xff]
        %v1307 = vld [vmem:[#allocation8 + $0x150] sm:$0xff]
        %v1308 = vld [vmem:[#allocation8 + $0x158] sm:$0xff]
        %v1309 = vld [vmem:[#allocation8 + $0x160] sm:$0xff]
        %v1310 = vld [vmem:[#allocation8 + $0x168] sm:$0xff]
        %v1311 = vld [vmem:[#allocation8 + $0x170] sm:$0xff]
        %v1312 = vld [vmem:[#allocation8 + $0x178] sm:$0xff]
        %v1313 = vld [vmem:[%s6] sm:$0x1]
        %v1315 = vlaneseq
        %v1316 = vshrl.u32 %v1315, 7
        %v1317 = vsub.s32 0, %v1316
        %v1318 = vrot.slane %v1313, %v1317
        %1320 = vmatprep.subr.mxu0 0.0
        %1321 = vmatpush1.msra.mxu0 %v1265
        %1322 = vmatprep.subr.mxu0 0.0
        %1323 = vmatpush1.msra.mxu0 %v1266
        %1324 = vmatprep.subr.mxu0 0.0
        %1325 = vmatpush1.msra.mxu0 %v1267
        %1326 = vmatprep.subr.mxu0 0.0
        %1327 = vmatpush1.msra.mxu0 %v1268
        %1328 = vmatprep.subr.mxu0 0.0
        %1329 = vmatpush1.msra.mxu0 %v1269
        %1330 = vmatprep.subr.mxu0 0.0
        %1331 = vmatpush1.msra.mxu0 %v1270
        %1332 = vmatprep.subr.mxu0 0.0
        %1333 = vmatpush1.msra.mxu0 %v1271
        %1334 = vmatprep.subr.mxu0 0.0
        %1335 = vmatpush1.msra.mxu0 %v1272
        %1336 = vmatprep.subr.mxu0 0.0
        %1337 = vmatpush1.msra.mxu0 %v1273
        %1338 = vmatprep.subr.mxu0 0.0
        %1339 = vmatpush1.msra.mxu0 %v1274
        %1340 = vmatprep.subr.mxu0 0.0
        %1341 = vmatpush1.msra.mxu0 %v1275
        %1342 = vmatprep.subr.mxu0 0.0
        %1343 = vmatpush1.msra.mxu0 %v1276
        %1344 = vmatprep.subr.mxu0 0.0
        %1345 = vmatpush1.msra.mxu0 %v1277
        %1346 = vmatprep.subr.mxu0 0.0
        %1347 = vmatpush1.msra.mxu0 %v1278
        %1348 = vmatprep.subr.mxu0 0.0
        %1349 = vmatpush1.msra.mxu0 %v1279
        %1350 = vmatprep.subr.mxu0 0.0
        %1351 = vmatpush1.msra.mxu0 %v1280
        %1352 = vmatprep.subr.mxu0 0.0
        %1353 = vmatpush1.msra.mxu0 %v1281
        %1354 = vmatprep.subr.mxu0 0.0
        %1355 = vmatpush1.msra.mxu0 %v1282
        %1356 = vmatprep.subr.mxu0 0.0
        %1357 = vmatpush1.msra.mxu0 %v1283
        %1358 = vmatprep.subr.mxu0 0.0
        %1359 = vmatpush1.msra.mxu0 %v1284
        %1360 = vmatprep.subr.mxu0 0.0
        %1361 = vmatpush1.msra.mxu0 %v1285
        %1362 = vmatprep.subr.mxu0 0.0
        %1363 = vmatpush1.msra.mxu0 %v1286
        %1364 = vmatprep.subr.mxu0 0.0
        %1365 = vmatpush1.msra.mxu0 %v1287
        %1366 = vmatprep.subr.mxu0 0.0
        %1367 = vmatpush1.msra.mxu0 %v1288
        %1368 = vmatprep.subr.mxu0 0.0
        %1369 = vmatpush1.msra.mxu0 %v1289
        %1370 = vmatprep.subr.mxu0 0.0
        %1371 = vmatpush1.msra.mxu0 %v1290
        %1372 = vmatprep.subr.mxu0 0.0
        %1373 = vmatpush1.msra.mxu0 %v1291
        %1374 = vmatprep.subr.mxu0 0.0
        %1375 = vmatpush1.msra.mxu0 %v1292
        %1376 = vmatprep.subr.mxu0 0.0
        %1377 = vmatpush1.msra.mxu0 %v1293
        %1378 = vmatprep.subr.mxu0 0.0
        %1379 = vmatpush1.msra.mxu0 %v1294
        %1380 = vmatprep.subr.mxu0 0.0
        %1381 = vmatpush1.msra.mxu0 %v1295
        %1382 = vmatprep.subr.mxu0 0.0
        %1383 = vmatpush1.msra.mxu0 %v1296
        %1384 = vmatprep.mubr.f32.mxu0 %v1254
        %1385 = vmatmul.mubr.f32.gmra.mrb[0].mxu0 %v1253
        %v1386 = vpop.f32.mrb[0].mxu0
        %v1387 = vadd.f32 %v1318, %v1386
        %v1388 = vpop.f32.mrb[0].mxu0
        %1389 = vmatprep.mubr.f32.mxu0 %v1257
        %1390 = vmatmul.mubr.f32.gmra.mrb[0].mxu0 %v1256
        %v1391 = vpop.f32.mrb[0].mxu0
        %v1392 = vadd.f32 %v1318, %v1391
        %v1393 = vpop.f32.mrb[0].mxu0
        %1394 = vmatprep.mubr.f32.mxu0 %v1260
        %1395 = vmatmul.mubr.f32.gmra.mrb[0].mxu0 %v1259
        %v1396 = vpop.f32.mrb[0].mxu0
        %v1397 = vadd.f32 %v1318, %v1396
        %v1398 = vpop.f32.mrb[0].mxu0
        %1399 = vmatprep.mubr.f32.mxu0 %v1263
        %1400 = vmatmul.mubr.f32.gmra.mrb[0].mxu0 %v1262
        %v1401 = vpop.f32.mrb[0].mxu0
        %v1402 = vadd.f32 %v1318, %v1401
        %v1403 = vpop.f32.mrb[0].mxu0
        %1404 = vdwg.mxu0
        %1405 = vmatprep.subr.mxu0 0.0
        %1406 = vmatpush1.msra.mxu0 %v1297
        %1407 = vmatprep.subr.mxu0 0.0
        %1408 = vmatpush1.msra.mxu0 %v1298
        %1409 = vmatprep.subr.mxu0 0.0
        %1410 = vmatpush1.msra.mxu0 %v1299
        %1411 = vmatprep.subr.mxu0 0.0
        %1412 = vmatpush1.msra.mxu0 %v1300
        %1413 = vmatprep.subr.mxu0 0.0
        %1414 = vmatpush1.msra.mxu0 %v1301
        %1415 = vmatprep.subr.mxu0 0.0
        %1416 = vmatpush1.msra.mxu0 %v1302
        %1417 = vmatprep.subr.mxu0 0.0
        %1418 = vmatpush1.msra.mxu0 %v1303
        %1419 = vmatprep.subr.mxu0 0.0
        %1420 = vmatpush1.msra.mxu0 %v1304
        %1421 = vmatprep.subr.mxu0 0.0
        %1422 = vmatpush1.msra.mxu0 %v1305
        %1423 = vmatprep.subr.mxu0 0.0
        %1424 = vmatpush1.msra.mxu0 %v1306
        %1425 = vmatprep.subr.mxu0 0.0
        %1426 = vmatpush1.msra.mxu0 %v1307
        %1427 = vmatprep.subr.mxu0 0.0
        %1428 = vmatpush1.msra.mxu0 %v1308
        %1429 = vmatprep.subr.mxu0 0.0
        %1430 = vmatpush1.msra.mxu0 %v1309
        %1431 = vmatprep.subr.mxu0 0.0
        %1432 = vmatpush1.msra.mxu0 %v1310
        %1433 = vmatprep.subr.mxu0 0.0
        %1434 = vmatpush1.msra.mxu0 %v1311
        %1435 = vmatprep.subr.mxu0 0.0
        %1436 = vmatpush1.msra.mxu0 %v1312
        %1437 = vmatprep.subr.mxu0 0.0
        %1438 = vmatpush1.msra.mxu0 0.0
        %1439 = vmatprep.subr.mxu0 0.0
        %1440 = vmatpush1.msra.mxu0 0.0
        %1441 = vmatprep.subr.mxu0 0.0
        %1442 = vmatpush1.msra.mxu0 0.0
        %1443 = vmatprep.subr.mxu0 0.0
        %1444 = vmatpush1.msra.mxu0 0.0
        %1445 = vmatprep.subr.mxu0 0.0
        %1446 = vmatpush1.msra.mxu0 0.0
        %1447 = vmatprep.subr.mxu0 0.0
        %1448 = vmatpush1.msra.mxu0 0.0
        %1449 = vmatprep.subr.mxu0 0.0
        %1450 = vmatpush1.msra.mxu0 0.0
        %1451 = vmatprep.subr.mxu0 0.0
        %1452 = vmatpush1.msra.mxu0 0.0
        %1453 = vmatprep.subr.mxu0 0.0
        %1454 = vmatpush1.msra.mxu0 0.0
        %1455 = vmatprep.subr.mxu0 0.0
        %1456 = vmatpush1.msra.mxu0 0.0
        %1457 = vmatprep.subr.mxu0 0.0
        %1458 = vmatpush1.msra.mxu0 0.0
        %1459 = vmatprep.subr.mxu0 0.0
        %1460 = vmatpush1.msra.mxu0 0.0
        %1461 = vmatprep.subr.mxu0 0.0
        %1462 = vmatpush1.msra.mxu0 0.0
        %1463 = vmatprep.subr.mxu0 0.0
        %1464 = vmatpush1.msra.mxu0 0.0
        %1465 = vmatprep.subr.mxu0 0.0
        %1466 = vmatpush1.msra.mxu0 0.0
        %1467 = vmatprep.subr.mxu0 0.0
        %1468 = vmatpush1.msra.mxu0 0.0
        %1469 = vmatprep.mubr.f32.mxu0 0.0
        %1470 = vmatmul.mubr.f32.gmra.mrb[0].mxu0 %v1255
        %v1471 = vpop.f32.mrb[0].mxu0
        %v1472 = vadd.f32 %v1387, %v1471
        %v1473 = vpop.f32.mrb[0].mxu0
        %1474 = vmatprep.mubr.f32.mxu0 0.0
        %1475 = vmatmul.mubr.f32.gmra.mrb[0].mxu0 %v1258
        %v1476 = vpop.f32.mrb[0].mxu0
        %v1477 = vadd.f32 %v1392, %v1476
        %v1478 = vpop.f32.mrb[0].mxu0
        %1479 = vmatprep.mubr.f32.mxu0 0.0
        %1480 = vmatmul.mubr.f32.gmra.mrb[0].mxu0 %v1261
        %v1481 = vpop.f32.mrb[0].mxu0
        %v1482 = vadd.f32 %v1397, %v1481
        %v1483 = vpop.f32.mrb[0].mxu0
        %1484 = vmatprep.mubr.f32.mxu0 0.0
        %1485 = vmatmul.mubr.f32.gmra.mrb[0].mxu0 %v1264
        %v1486 = vpop.f32.mrb[0].mxu0
        %v1487 = vadd.f32 %v1402, %v1486
        %v1488 = vpop.f32.mrb[0].mxu0
        %1489 = vdwg.mxu0
        %1490 = vst [vmem:[%s341] sm:$0xff] %v1472
        %1491 = vst [vmem:[%s341 + $0x8] sm:$0xff] %v1477
        %1492 = vst [vmem:[%s341 + $0x10] sm:$0xff] %v1482
        %1493 = vst [vmem:[%s341 + $0x18] sm:$0xff] %v1487
        %s1494 = sand.u32 %s186, 1
        %s1495 = scalar_lea.sflag [#allocation4], %s1494
        %s1496 = sand.u32 %s186, 1
        %s1497 = smul.addr %s1496, 32
        %s1498 = scalar_lea.vmem [#allocation10], %s1497
        // Predicated region
        $region65: #{tpu_custom_call.1} parent=47 // pred_check
          %p1499 = pneg %p196
        $region66: #{tpu_custom_call.1} parent=47 // pred_check_branch
          %1501 = sbr.rel (%p1499) target = $region68
        $region67: #{tpu_custom_call.1} parent=47 // pred_region
          %s1502 = smul.u32 4, %s26
          %s1504 = ssub.s32 512, 512
          %1505 = vsyncadd %s1495, %s1504
          %s1506 = smul.addr %s1502, 128
          %s1507 = scalar_lea.hbm %s7, %s1506
          %s1508 = sshll.u32 %s1498, 4
          %s1509 = int_to_ptr.vmem [resolvable:$true] %s1508
          %1514 = dma.vmem_to_hbm [thread:$0]  %s1509, 512, %s1507, %s1495, 128, 128, 8
        $region68: #{tpu_custom_call.1} parent=47 // pred_fallthru
          _
      $region48: #{tpu_custom_call.1} parent=5 // pred_fallthru
        _
      %p1515 = scmp.le.s32.totalorder 2, %s21
      // Predicated region
      $region69: #{tpu_custom_call.1} parent=5 // pred_check
        %p1516 = pneg %p1515
      $region70: #{tpu_custom_call.1} parent=5 // pred_check_branch
        %1518 = sbr.rel (%p1516) target = $region72
      $region71: #{tpu_custom_call.1} parent=5 // pred_region
        %s1519 = ssub.s32 %s21, 2
        // Predicated region
        $region73: #{tpu_custom_call.1} parent=71 // pred_check
          %p1520 = pneg %p202
        $region74: #{tpu_custom_call.1} parent=71 // pred_check_branch
          %1522 = sbr.rel (%p1520) target = $region76
        $region75: #{tpu_custom_call.1} parent=71 // pred_region
          %s1523 = sand.u32 %s187, 1
          %s1524 = scalar_lea.sflag [#allocation4], %s1523
          %s1525 = sand.u32 %s187, 1
          %s1526 = smul.addr %s1525, 32
          %s1527 = scalar_lea.vmem [#allocation10], %s1526
          %1528 = dma.done %s1524, 512
        $region76: #{tpu_custom_call.1} parent=71 // pred_fallthru
          _
      $region72: #{tpu_custom_call.1} parent=5 // pred_fallthru
        _
    $region6: #{tpu_custom_call.1} parent=1 // loop_footer
      %s25 = sadd.s32 1, %s21
    $region7: #{tpu_custom_call.1} parent=1 // loop_footer_branch
      %20 = sbr.rel target = $region3
    $region8: #{tpu_custom_call.1} parent=1 // loop_exit
      _
    %1529 = vsyncpa [#allocation3], 1
    %s1530 = scalar_lea.sflag [#allocation3], 1
    %1531 = vsyncpa %s1530, 1
    %1532 = vsyncpa [#allocation6], 1
    %1533 = vsyncpa [#allocation9], 1
    %1534 = vsyncpa [#allocation4], 1
    %s1535 = scalar_lea.sflag [#allocation4], 1
    %1536 = vsyncpa %s1535, 1

</llo_original>
